<compile_context>
chip_gen: v5e
topology: v5e:2x2
jax: 0.10.0
libtpu: 0.0.40
codegen_flags: <defaults>
</compile_context>

<pallas_src>
import functools

import jax
import jax.numpy as jnp
from jax import lax
from jax.experimental import pallas as pl
from jax.experimental.pallas import tpu as pltpu

KSIZE = 7
PAD = (KSIZE - 1) // 2  # 3


def _rows_to_plane(v, H, W):
    # (1, H*W) lane-dense row -> (H, W) plane via static slices + concatenate.
    rows = [v[:, h * W:(h + 1) * W] for h in range(H)]
    return jnp.concatenate(rows, axis=0)                    # (H, W)


def _plane_to_row(p, H, W):
    # (H, W) plane -> (1, H*W) lane-dense row.
    rows = [p[h:h + 1, :] for h in range(H)]
    return jnp.concatenate(rows, axis=1)                    # (1, H*W)


def _hpad(p, H):
    # zero-pad a (H, W) plane horizontally to (H, W + 2*PAD).
    z = jnp.zeros((H, PAD), p.dtype)
    return jnp.concatenate([z, p, z], axis=1)


def _spatial_gate_kernel(w_ref, bn_ref, x_ref, o_ref, *, nb, C, H, W):
    # w_ref : SMEM (2*7*7,)     flattened conv weight (OIHW with O=1 squeezed)
    # bn_ref: SMEM (2,)         [bn_scale, bn_shift] (folded inference BN)
    # x_ref : VMEM (nb, C, H*W) lane-dense spatial dim
    # o_ref : VMEM (nb, C, H*W)
    f32 = jnp.float32
    S = W + 2 * PAD                  # per-strip width of a padded compressed plane
    L = 2 * nb * S                   # all (max | mean) strips packed along lanes
    Lx = L + (KSIZE - 1)             # zero tail so every kw lane-slice is in bounds

    # ---- phase 1: channel pooling. Read x once per sample, consume immediately
    # (no slab kept live across the conv -> no spills at large C).
    max_strips, mean_strips = [], []
    for b in range(nb):                                      # nb is small & static
        xb = x_ref[b]                                        # (C, HW), native dtype
        cmax = jnp.max(xb, axis=0, keepdims=True).astype(f32)            # (1, HW)
        cmean = jnp.sum(xb.astype(f32), axis=0, keepdims=True) * (1.0 / C)
        max_strips.append(_hpad(_rows_to_plane(cmax, H, W), H))          # (H, S)
        mean_strips.append(_hpad(_rows_to_plane(cmean, H, W), H))        # (H, S)

    tail = jnp.zeros((H, KSIZE - 1), f32)
    stacked = jnp.concatenate(max_strips + mean_strips + [tail], axis=1)  # (H, Lx)
    zrow = jnp.zeros((PAD, Lx), f32)
    stacked = jnp.concatenate([zrow, stacked, zrow], axis=0)              # (H+2P, Lx)

    # ---- phase 2: ONE 7x7 conv over all 2*nb packed planes (VPU, not MXU).
    lane = lax.broadcasted_iota(jnp.int32, (1, L), 1)
    mask_max = (lane < nb * S).astype(f32)      # strips [0, nb)    -> max planes
    mask_mean = 1.0 - mask_max                  # strips [nb, 2nb)  -> mean planes

    acc = jnp.zeros((H, L), f32)
    for kh in range(KSIZE):
        rows = stacked[kh:kh + H, :]            # hoisted sublane shift (7 total)
        for kw in range(KSIZE):
            w_mx = w_ref[0 * KSIZE * KSIZE + kh * KSIZE + kw]
            w_mn = w_ref[1 * KSIZE * KSIZE + kh * KSIZE + kw]
            wrow = w_mx * mask_max + w_mn * mask_mean        # (1, L)
            acc = acc + wrow * rows[:, kw:kw + L]            # lane slice inside

    # ---- phase 3: folded BN + sigmoid gate; re-read x fresh, lane-dense store.
    bn_scale = bn_ref[0]
    bn_shift = bn_ref[1]
    for b in range(nb):
        conv_b = (acc[:, b * S:b * S + W] +
                  acc[:, (nb + b) * S:(nb + b) * S + W])                 # (H, W)
        scale = jax.nn.sigmoid(conv_b * bn_scale + bn_shift)             # f32
        scale_row = _plane_to_row(scale, H, W).astype(o_ref.dtype)       # (1, HW)
        # TODO(synk): on v5e with bf16 inputs keep this multiply in f32 (no bf16 VPU).
        o_ref[b] = (x_ref[b] * scale_row).astype(o_ref.dtype)


def _vmem_capacity_bytes():
    try:
        info = pltpu.get_tpu_info()
        cap = getattr(info, "vmem_capacity_bytes", None)
        if cap:
            return int(cap)
    except Exception:
        pass
    return 64 << 20   # conservative fallback (v7x per-TensorCore VMEM)


def _pick_batch_block(N, bytes_per_sample, block_budget, target_block=4 << 20):
    """Largest divisor nb of N such that:
       - 4 * nb * bytes_per_sample (double-buffered in+out) fits the scoped-VMEM budget,
       - the grid keeps >= 2 steps when N >= 2 (so v7x's two TensorCores both get work),
       - the (nb, C, HW) block stays around the 1-4 MiB streaming sweet spot.
    """
    # TODO(synk): relax the divisor requirement (partial last block) for awkward N, and
    #             fall back to a C-tiled two-pass kernel when a single sample no longer fits.
    best = 1
    for cand in range(1, N + 1):
        if N % cand:
            continue
        if N >= 2 and N // cand < 2:
            continue
        if 4 * cand * bytes_per_sample > block_budget:
            continue
        if cand > 1 and cand * bytes_per_sample > target_block:
            continue
        best = cand
    return best


def spatial_gate(x, conv_w, bn_gamma, bn_beta, bn_mean, bn_var, eps=1e-5):
    """x: (N, C, H, W). conv_w: (1, 2, 7, 7). Returns x * sigmoid(BN(conv(pool(x))))."""
    N, C, H, W = x.shape
    HW = H * W

    # Fold BatchNorm2d(1) (inference) into scale/shift on the conv output (conv has no bias).
    # TODO(synk): training-mode BatchNorm (batch statistics + running-stat update) not implemented.
    inv_std = bn_gamma / jnp.sqrt(bn_var + eps)
    bn_scale = inv_std.reshape(())
    bn_shift = (bn_beta - bn_mean * inv_std).reshape(())
    bn_params = jnp.stack([bn_scale, bn_shift]).astype(jnp.float32)   # (2,)
    w_flat = conv_w.reshape(-1).astype(jnp.float32)                   # (98,)

    # Lane-dense (N, C, H*W) layout: metadata-only reshape, unmasked stores on the big tensor.
    # TODO(synk): for HW % 128 != 0 with C % 128 == 0 a channels-last layout would be denser.
    x3 = x.reshape(N, C, HW)

    vmem_cap = _vmem_capacity_bytes()
    vmem_limit = int(min(vmem_cap // 2, 64 << 20))   # ~64 MiB on v5e/v6e, ~32 MiB on v7x
    block_budget = vmem_limit // 2                   # headroom for scratch / pipeline internals
    nb = _pick_batch_block(N, C * HW * x.dtype.itemsize, block_budget)

    kernel = functools.partial(_spatial_gate_kernel, nb=nb, C=C, H=H, W=W)
    out = pl.pallas_call(
        kernel,
        out_shape=jax.ShapeDtypeStruct((N, C, HW), x.dtype),
        grid=(N // nb,),
        in_specs=[
            pl.BlockSpec(memory_space=pltpu.MemorySpace.SMEM),   # conv weight (98,)
            pl.BlockSpec(memory_space=pltpu.MemorySpace.SMEM),   # folded BN scale/shift (2,)
            pl.BlockSpec((nb, C, HW), lambda n: (n, 0, 0)),
        ],
        out_specs=pl.BlockSpec((nb, C, HW), lambda n: (n, 0, 0)),
        compiler_params=pltpu.CompilerParams(
            dimension_semantics=("parallel",),
            vmem_limit_bytes=vmem_limit),
    )(w_flat, bn_params, x3)
    return out.reshape(N, C, H, W)


def spatial_gate_reference(x, conv_w, bn_gamma, bn_beta, bn_mean, bn_var, eps=1e-5):
    cmax = jnp.max(x, axis=1, keepdims=True)
    cmean = jnp.mean(x, axis=1, keepdims=True)
    comp = jnp.concatenate([cmax, cmean], axis=1)          # (N, 2, H, W)
    y = lax.conv_general_dilated(
        comp, conv_w, window_strides=(1, 1),
        padding=[(PAD, PAD), (PAD, PAD)],
        dimension_numbers=("NCHW", "OIHW", "NCHW"))
    y = (y - bn_mean) / jnp.sqrt(bn_var + eps) * bn_gamma + bn_beta
    return x * jax.nn.sigmoid(y)


if __name__ == "__main__":
    key = jax.random.PRNGKey(0)
    kx, kw = jax.random.split(key)

    N, C, H, W = 2, 4, 16, 16
    x = jax.random.normal(kx, (N, C, H, W), dtype=jnp.float32)

    # Deterministic synthetic parameters (shapes from the module __init__).
    conv_w = jax.random.normal(kw, (1, 2, KSIZE, KSIZE), dtype=jnp.float32) * 0.1
    bn_gamma = jnp.ones((1,), jnp.float32)
    bn_beta = jnp.zeros((1,), jnp.float32)
    bn_mean = jnp.zeros((1,), jnp.float32)
    bn_var = jnp.ones((1,), jnp.float32)

    out = spatial_gate(x, conv_w, bn_gamma, bn_beta, bn_mean, bn_var)
    out = jax.block_until_ready(out)

    ref = spatial_gate_reference(x, conv_w, bn_gamma, bn_beta, bn_mean, bn_var)
    assert out.shape == (N, C, H, W)
    assert jnp.allclose(out, ref, atol=1e-5, rtol=1e-5), "mismatch vs reference"

    print("KERNEL_OK")
</pallas_src>

<mosaic_0001>
module attributes {stable_mosaic.version = 11 : i64} {
  func.func @_spatial_gate_kernel(%arg0: i32, %arg1: memref<98xf32, #tpu.memory_space<smem>>, %arg2: memref<2xf32, #tpu.memory_space<smem>>, %arg3: memref<1x4x256xf32, #tpu.memory_space<vmem>>, %arg4: memref<1x4x256xf32, #tpu.memory_space<vmem>>) attributes {dimension_semantics = [#tpu.dimension_semantics<parallel>], iteration_bounds = array<i64: 2>, scalar_prefetch = 0 : i64, scratch_operands = 0 : i64, tpu.core_type = #tpu.core_type<tc>, window_params = [{transform_indices = @transform_0, window_bounds = array<i64: 98>}, {transform_indices = @transform_1, window_bounds = array<i64: 2>}, {transform_indices = @transform_2, window_bounds = array<i64: 1, 4, 256>}, {transform_indices = @transform_3, window_bounds = array<i64: 1, 4, 256>}]} {
    %c0 = arith.constant 0 : index
    %c0_0 = arith.constant 0 : index
    %c0_1 = arith.constant 0 : index
    %0 = vector.load %arg3[%c0, %c0_0, %c0_1] : memref<1x4x256xf32, #tpu.memory_space<vmem>>, vector<1x4x256xf32>
    %1 = vector.shape_cast %0 : vector<1x4x256xf32> to vector<4x256xf32>
    %cst = arith.constant dense<0xFF800000> : vector<256xf32>
    %2 = vector.multi_reduction <maximumf>, %1, %cst [0] : vector<4x256xf32> to vector<256xf32>
    %3 = vector.shape_cast %2 : vector<256xf32> to vector<1x256xf32>
    %cst_2 = arith.constant dense<0.000000e+00> : vector<256xf32>
    %4 = vector.multi_reduction <add>, %1, %cst_2 [0] : vector<4x256xf32> to vector<256xf32>
    %5 = vector.shape_cast %4 : vector<256xf32> to vector<1x256xf32>
    %cst_3 = arith.constant 2.500000e-01 : f32
    %6 = vector.broadcast %cst_3 : f32 to vector<1x256xf32>
    %7 = arith.mulf %5, %6 : vector<1x256xf32>
    %8 = vector.extract_strided_slice %3 {offsets = [0, 0], sizes = [1, 16], strides = [1, 1]} : vector<1x256xf32> to vector<1x16xf32>
    %9 = vector.extract_strided_slice %3 {offsets = [0, 16], sizes = [1, 16], strides = [1, 1]} : vector<1x256xf32> to vector<1x16xf32>
    %10 = vector.extract_strided_slice %3 {offsets = [0, 32], sizes = [1, 16], strides = [1, 1]} : vector<1x256xf32> to vector<1x16xf32>
    %11 = vector.extract_strided_slice %3 {offsets = [0, 48], sizes = [1, 16], strides = [1, 1]} : vector<1x256xf32> to vector<1x16xf32>
    %12 = vector.extract_strided_slice %3 {offsets = [0, 64], sizes = [1, 16], strides = [1, 1]} : vector<1x256xf32> to vector<1x16xf32>
    %13 = vector.extract_strided_slice %3 {offsets = [0, 80], sizes = [1, 16], strides = [1, 1]} : vector<1x256xf32> to vector<1x16xf32>
    %14 = vector.extract_strided_slice %3 {offsets = [0, 96], sizes = [1, 16], strides = [1, 1]} : vector<1x256xf32> to vector<1x16xf32>
    %15 = vector.extract_strided_slice %3 {offsets = [0, 112], sizes = [1, 16], strides = [1, 1]} : vector<1x256xf32> to vector<1x16xf32>
    %16 = vector.extract_strided_slice %3 {offsets = [0, 128], sizes = [1, 16], strides = [1, 1]} : vector<1x256xf32> to vector<1x16xf32>
    %17 = vector.extract_strided_slice %3 {offsets = [0, 144], sizes = [1, 16], strides = [1, 1]} : vector<1x256xf32> to vector<1x16xf32>
    %18 = vector.extract_strided_slice %3 {offsets = [0, 160], sizes = [1, 16], strides = [1, 1]} : vector<1x256xf32> to vector<1x16xf32>
    %19 = vector.extract_strided_slice %3 {offsets = [0, 176], sizes = [1, 16], strides = [1, 1]} : vector<1x256xf32> to vector<1x16xf32>
    %20 = vector.extract_strided_slice %3 {offsets = [0, 192], sizes = [1, 16], strides = [1, 1]} : vector<1x256xf32> to vector<1x16xf32>
    %21 = vector.extract_strided_slice %3 {offsets = [0, 208], sizes = [1, 16], strides = [1, 1]} : vector<1x256xf32> to vector<1x16xf32>
    %22 = vector.extract_strided_slice %3 {offsets = [0, 224], sizes = [1, 16], strides = [1, 1]} : vector<1x256xf32> to vector<1x16xf32>
    %23 = vector.extract_strided_slice %3 {offsets = [0, 240], sizes = [1, 16], strides = [1, 1]} : vector<1x256xf32> to vector<1x16xf32>
    %24 = tpu.concatenate %8, %9, %10, %11, %12, %13, %14, %15, %16, %17, %18, %19, %20, %21, %22, %23 in 0 : vector<1x16xf32>, vector<1x16xf32>, vector<1x16xf32>, vector<1x16xf32>, vector<1x16xf32>, vector<1x16xf32>, vector<1x16xf32>, vector<1x16xf32>, vector<1x16xf32>, vector<1x16xf32>, vector<1x16xf32>, vector<1x16xf32>, vector<1x16xf32>, vector<1x16xf32>, vector<1x16xf32>, vector<1x16xf32> -> vector<16x16xf32>
    %cst_4 = arith.constant 0.000000e+00 : f32
    %25 = vector.broadcast %cst_4 : f32 to vector<16x3xf32>
    %26 = tpu.concatenate %25, %24, %25 in 1 : vector<16x3xf32>, vector<16x16xf32>, vector<16x3xf32> -> vector<16x22xf32>
    %27 = vector.extract_strided_slice %7 {offsets = [0, 0], sizes = [1, 16], strides = [1, 1]} : vector<1x256xf32> to vector<1x16xf32>
    %28 = vector.extract_strided_slice %7 {offsets = [0, 16], sizes = [1, 16], strides = [1, 1]} : vector<1x256xf32> to vector<1x16xf32>
    %29 = vector.extract_strided_slice %7 {offsets = [0, 32], sizes = [1, 16], strides = [1, 1]} : vector<1x256xf32> to vector<1x16xf32>
    %30 = vector.extract_strided_slice %7 {offsets = [0, 48], sizes = [1, 16], strides = [1, 1]} : vector<1x256xf32> to vector<1x16xf32>
    %31 = vector.extract_strided_slice %7 {offsets = [0, 64], sizes = [1, 16], strides = [1, 1]} : vector<1x256xf32> to vector<1x16xf32>
    %32 = vector.extract_strided_slice %7 {offsets = [0, 80], sizes = [1, 16], strides = [1, 1]} : vector<1x256xf32> to vector<1x16xf32>
    %33 = vector.extract_strided_slice %7 {offsets = [0, 96], sizes = [1, 16], strides = [1, 1]} : vector<1x256xf32> to vector<1x16xf32>
    %34 = vector.extract_strided_slice %7 {offsets = [0, 112], sizes = [1, 16], strides = [1, 1]} : vector<1x256xf32> to vector<1x16xf32>
    %35 = vector.extract_strided_slice %7 {offsets = [0, 128], sizes = [1, 16], strides = [1, 1]} : vector<1x256xf32> to vector<1x16xf32>
    %36 = vector.extract_strided_slice %7 {offsets = [0, 144], sizes = [1, 16], strides = [1, 1]} : vector<1x256xf32> to vector<1x16xf32>
    %37 = vector.extract_strided_slice %7 {offsets = [0, 160], sizes = [1, 16], strides = [1, 1]} : vector<1x256xf32> to vector<1x16xf32>
    %38 = vector.extract_strided_slice %7 {offsets = [0, 176], sizes = [1, 16], strides = [1, 1]} : vector<1x256xf32> to vector<1x16xf32>
    %39 = vector.extract_strided_slice %7 {offsets = [0, 192], sizes = [1, 16], strides = [1, 1]} : vector<1x256xf32> to vector<1x16xf32>
    %40 = vector.extract_strided_slice %7 {offsets = [0, 208], sizes = [1, 16], strides = [1, 1]} : vector<1x256xf32> to vector<1x16xf32>
    %41 = vector.extract_strided_slice %7 {offsets = [0, 224], sizes = [1, 16], strides = [1, 1]} : vector<1x256xf32> to vector<1x16xf32>
    %42 = vector.extract_strided_slice %7 {offsets = [0, 240], sizes = [1, 16], strides = [1, 1]} : vector<1x256xf32> to vector<1x16xf32>
    %43 = tpu.concatenate %27, %28, %29, %30, %31, %32, %33, %34, %35, %36, %37, %38, %39, %40, %41, %42 in 0 : vector<1x16xf32>, vector<1x16xf32>, vector<1x16xf32>, vector<1x16xf32>, vector<1x16xf32>, vector<1x16xf32>, vector<1x16xf32>, vector<1x16xf32>, vector<1x16xf32>, vector<1x16xf32>, vector<1x16xf32>, vector<1x16xf32>, vector<1x16xf32>, vector<1x16xf32>, vector<1x16xf32>, vector<1x16xf32> -> vector<16x16xf32>
    %cst_5 = arith.constant 0.000000e+00 : f32
    %44 = vector.broadcast %cst_5 : f32 to vector<16x3xf32>
    %45 = tpu.concatenate %44, %43, %44 in 1 : vector<16x3xf32>, vector<16x16xf32>, vector<16x3xf32> -> vector<16x22xf32>
    %cst_6 = arith.constant 0.000000e+00 : f32
    %46 = vector.broadcast %cst_6 : f32 to vector<16x6xf32>
    %47 = tpu.concatenate %26, %45, %46 in 1 : vector<16x22xf32>, vector<16x22xf32>, vector<16x6xf32> -> vector<16x50xf32>
    %cst_7 = arith.constant 0.000000e+00 : f32
    %48 = vector.broadcast %cst_7 : f32 to vector<3x50xf32>
    %49 = tpu.concatenate %48, %47, %48 in 0 : vector<3x50xf32>, vector<16x50xf32>, vector<3x50xf32> -> vector<22x50xf32>
    %50 = tpu.iota {dimensions = array<i32: 1>} : vector<1x44xi32>
    %c22_i32 = arith.constant 22 : i32
    %51 = vector.broadcast %c22_i32 : i32 to vector<1x44xi32>
    %52 = arith.cmpi slt, %50, %51 : vector<1x44xi32>
    %53 = arith.extui %52 : vector<1x44xi1> to vector<1x44xi32>
    %54 = arith.sitofp %53 : vector<1x44xi32> to vector<1x44xf32>
    %cst_8 = arith.constant 1.000000e+00 : f32
    %55 = vector.broadcast %cst_8 : f32 to vector<1x44xf32>
    %56 = arith.subf %55, %54 : vector<1x44xf32>
    %cst_9 = arith.constant 0.000000e+00 : f32
    %57 = vector.broadcast %cst_9 : f32 to vector<16x44xf32>
    %58 = vector.extract_strided_slice %49 {offsets = [0, 0], sizes = [16, 50], strides = [1, 1]} : vector<22x50xf32> to vector<16x50xf32>
    %c0_10 = arith.constant 0 : index
    %59 = memref.load %arg1[%c0_10] : memref<98xf32, #tpu.memory_space<smem>>
    %c49 = arith.constant 49 : index
    %60 = memref.load %arg1[%c49] : memref<98xf32, #tpu.memory_space<smem>>
    %61 = vector.broadcast %59 : f32 to vector<1x44xf32>
    %62 = arith.mulf %61, %54 : vector<1x44xf32>
    %63 = vector.broadcast %60 : f32 to vector<1x44xf32>
    %64 = arith.mulf %63, %56 : vector<1x44xf32>
    %65 = arith.addf %62, %64 : vector<1x44xf32>
    %66 = vector.extract_strided_slice %58 {offsets = [0, 0], sizes = [16, 44], strides = [1, 1]} : vector<16x50xf32> to vector<16x44xf32>
    %67 = vector.broadcast %65 : vector<1x44xf32> to vector<16x44xf32>
    %68 = arith.mulf %67, %66 : vector<16x44xf32>
    %69 = arith.addf %57, %68 : vector<16x44xf32>
    %c1 = arith.constant 1 : index
    %70 = memref.load %arg1[%c1] : memref<98xf32, #tpu.memory_space<smem>>
    %c50 = arith.constant 50 : index
    %71 = memref.load %arg1[%c50] : memref<98xf32, #tpu.memory_space<smem>>
    %72 = vector.broadcast %70 : f32 to vector<1x44xf32>
    %73 = arith.mulf %72, %54 : vector<1x44xf32>
    %74 = vector.broadcast %71 : f32 to vector<1x44xf32>
    %75 = arith.mulf %74, %56 : vector<1x44xf32>
    %76 = arith.addf %73, %75 : vector<1x44xf32>
    %77 = vector.extract_strided_slice %58 {offsets = [0, 1], sizes = [16, 44], strides = [1, 1]} : vector<16x50xf32> to vector<16x44xf32>
    %78 = vector.broadcast %76 : vector<1x44xf32> to vector<16x44xf32>
    %79 = arith.mulf %78, %77 : vector<16x44xf32>
    %80 = arith.addf %69, %79 : vector<16x44xf32>
    %c2 = arith.constant 2 : index
    %81 = memref.load %arg1[%c2] : memref<98xf32, #tpu.memory_space<smem>>
    %c51 = arith.constant 51 : index
    %82 = memref.load %arg1[%c51] : memref<98xf32, #tpu.memory_space<smem>>
    %83 = vector.broadcast %81 : f32 to vector<1x44xf32>
    %84 = arith.mulf %83, %54 : vector<1x44xf32>
    %85 = vector.broadcast %82 : f32 to vector<1x44xf32>
    %86 = arith.mulf %85, %56 : vector<1x44xf32>
    %87 = arith.addf %84, %86 : vector<1x44xf32>
    %88 = vector.extract_strided_slice %58 {offsets = [0, 2], sizes = [16, 44], strides = [1, 1]} : vector<16x50xf32> to vector<16x44xf32>
    %89 = vector.broadcast %87 : vector<1x44xf32> to vector<16x44xf32>
    %90 = arith.mulf %89, %88 : vector<16x44xf32>
    %91 = arith.addf %80, %90 : vector<16x44xf32>
    %c3 = arith.constant 3 : index
    %92 = memref.load %arg1[%c3] : memref<98xf32, #tpu.memory_space<smem>>
    %c52 = arith.constant 52 : index
    %93 = memref.load %arg1[%c52] : memref<98xf32, #tpu.memory_space<smem>>
    %94 = vector.broadcast %92 : f32 to vector<1x44xf32>
    %95 = arith.mulf %94, %54 : vector<1x44xf32>
    %96 = vector.broadcast %93 : f32 to vector<1x44xf32>
    %97 = arith.mulf %96, %56 : vector<1x44xf32>
    %98 = arith.addf %95, %97 : vector<1x44xf32>
    %99 = vector.extract_strided_slice %58 {offsets = [0, 3], sizes = [16, 44], strides = [1, 1]} : vector<16x50xf32> to vector<16x44xf32>
    %100 = vector.broadcast %98 : vector<1x44xf32> to vector<16x44xf32>
    %101 = arith.mulf %100, %99 : vector<16x44xf32>
    %102 = arith.addf %91, %101 : vector<16x44xf32>
    %c4 = arith.constant 4 : index
    %103 = memref.load %arg1[%c4] : memref<98xf32, #tpu.memory_space<smem>>
    %c53 = arith.constant 53 : index
    %104 = memref.load %arg1[%c53] : memref<98xf32, #tpu.memory_space<smem>>
    %105 = vector.broadcast %103 : f32 to vector<1x44xf32>
    %106 = arith.mulf %105, %54 : vector<1x44xf32>
    %107 = vector.broadcast %104 : f32 to vector<1x44xf32>
    %108 = arith.mulf %107, %56 : vector<1x44xf32>
    %109 = arith.addf %106, %108 : vector<1x44xf32>
    %110 = vector.extract_strided_slice %58 {offsets = [0, 4], sizes = [16, 44], strides = [1, 1]} : vector<16x50xf32> to vector<16x44xf32>
    %111 = vector.broadcast %109 : vector<1x44xf32> to vector<16x44xf32>
    %112 = arith.mulf %111, %110 : vector<16x44xf32>
    %113 = arith.addf %102, %112 : vector<16x44xf32>
    %c5 = arith.constant 5 : index
    %114 = memref.load %arg1[%c5] : memref<98xf32, #tpu.memory_space<smem>>
    %c54 = arith.constant 54 : index
    %115 = memref.load %arg1[%c54] : memref<98xf32, #tpu.memory_space<smem>>
    %116 = vector.broadcast %114 : f32 to vector<1x44xf32>
    %117 = arith.mulf %116, %54 : vector<1x44xf32>
    %118 = vector.broadcast %115 : f32 to vector<1x44xf32>
    %119 = arith.mulf %118, %56 : vector<1x44xf32>
    %120 = arith.addf %117, %119 : vector<1x44xf32>
    %121 = vector.extract_strided_slice %58 {offsets = [0, 5], sizes = [16, 44], strides = [1, 1]} : vector<16x50xf32> to vector<16x44xf32>
    %122 = vector.broadcast %120 : vector<1x44xf32> to vector<16x44xf32>
    %123 = arith.mulf %122, %121 : vector<16x44xf32>
    %124 = arith.addf %113, %123 : vector<16x44xf32>
    %c6 = arith.constant 6 : index
    %125 = memref.load %arg1[%c6] : memref<98xf32, #tpu.memory_space<smem>>
    %c55 = arith.constant 55 : index
    %126 = memref.load %arg1[%c55] : memref<98xf32, #tpu.memory_space<smem>>
    %127 = vector.broadcast %125 : f32 to vector<1x44xf32>
    %128 = arith.mulf %127, %54 : vector<1x44xf32>
    %129 = vector.broadcast %126 : f32 to vector<1x44xf32>
    %130 = arith.mulf %129, %56 : vector<1x44xf32>
    %131 = arith.addf %128, %130 : vector<1x44xf32>
    %132 = vector.extract_strided_slice %58 {offsets = [0, 6], sizes = [16, 44], strides = [1, 1]} : vector<16x50xf32> to vector<16x44xf32>
    %133 = vector.broadcast %131 : vector<1x44xf32> to vector<16x44xf32>
    %134 = arith.mulf %133, %132 : vector<16x44xf32>
    %135 = arith.addf %124, %134 : vector<16x44xf32>
    %136 = vector.extract_strided_slice %49 {offsets = [1, 0], sizes = [16, 50], strides = [1, 1]} : vector<22x50xf32> to vector<16x50xf32>
    %c7 = arith.constant 7 : index
    %137 = memref.load %arg1[%c7] : memref<98xf32, #tpu.memory_space<smem>>
    %c56 = arith.constant 56 : index
    %138 = memref.load %arg1[%c56] : memref<98xf32, #tpu.memory_space<smem>>
    %139 = vector.broadcast %137 : f32 to vector<1x44xf32>
    %140 = arith.mulf %139, %54 : vector<1x44xf32>
    %141 = vector.broadcast %138 : f32 to vector<1x44xf32>
    %142 = arith.mulf %141, %56 : vector<1x44xf32>
    %143 = arith.addf %140, %142 : vector<1x44xf32>
    %144 = vector.extract_strided_slice %136 {offsets = [0, 0], sizes = [16, 44], strides = [1, 1]} : vector<16x50xf32> to vector<16x44xf32>
    %145 = vector.broadcast %143 : vector<1x44xf32> to vector<16x44xf32>
    %146 = arith.mulf %145, %144 : vector<16x44xf32>
    %147 = arith.addf %135, %146 : vector<16x44xf32>
    %c8 = arith.constant 8 : index
    %148 = memref.load %arg1[%c8] : memref<98xf32, #tpu.memory_space<smem>>
    %c57 = arith.constant 57 : index
    %149 = memref.load %arg1[%c57] : memref<98xf32, #tpu.memory_space<smem>>
    %150 = vector.broadcast %148 : f32 to vector<1x44xf32>
    %151 = arith.mulf %150, %54 : vector<1x44xf32>
    %152 = vector.broadcast %149 : f32 to vector<1x44xf32>
    %153 = arith.mulf %152, %56 : vector<1x44xf32>
    %154 = arith.addf %151, %153 : vector<1x44xf32>
    %155 = vector.extract_strided_slice %136 {offsets = [0, 1], sizes = [16, 44], strides = [1, 1]} : vector<16x50xf32> to vector<16x44xf32>
    %156 = vector.broadcast %154 : vector<1x44xf32> to vector<16x44xf32>
    %157 = arith.mulf %156, %155 : vector<16x44xf32>
    %158 = arith.addf %147, %157 : vector<16x44xf32>
    %c9 = arith.constant 9 : index
    %159 = memref.load %arg1[%c9] : memref<98xf32, #tpu.memory_space<smem>>
    %c58 = arith.constant 58 : index
    %160 = memref.load %arg1[%c58] : memref<98xf32, #tpu.memory_space<smem>>
    %161 = vector.broadcast %159 : f32 to vector<1x44xf32>
    %162 = arith.mulf %161, %54 : vector<1x44xf32>
    %163 = vector.broadcast %160 : f32 to vector<1x44xf32>
    %164 = arith.mulf %163, %56 : vector<1x44xf32>
    %165 = arith.addf %162, %164 : vector<1x44xf32>
    %166 = vector.extract_strided_slice %136 {offsets = [0, 2], sizes = [16, 44], strides = [1, 1]} : vector<16x50xf32> to vector<16x44xf32>
    %167 = vector.broadcast %165 : vector<1x44xf32> to vector<16x44xf32>
    %168 = arith.mulf %167, %166 : vector<16x44xf32>
    %169 = arith.addf %158, %168 : vector<16x44xf32>
    %c10 = arith.constant 10 : index
    %170 = memref.load %arg1[%c10] : memref<98xf32, #tpu.memory_space<smem>>
    %c59 = arith.constant 59 : index
    %171 = memref.load %arg1[%c59] : memref<98xf32, #tpu.memory_space<smem>>
    %172 = vector.broadcast %170 : f32 to vector<1x44xf32>
    %173 = arith.mulf %172, %54 : vector<1x44xf32>
    %174 = vector.broadcast %171 : f32 to vector<1x44xf32>
    %175 = arith.mulf %174, %56 : vector<1x44xf32>
    %176 = arith.addf %173, %175 : vector<1x44xf32>
    %177 = vector.extract_strided_slice %136 {offsets = [0, 3], sizes = [16, 44], strides = [1, 1]} : vector<16x50xf32> to vector<16x44xf32>
    %178 = vector.broadcast %176 : vector<1x44xf32> to vector<16x44xf32>
    %179 = arith.mulf %178, %177 : vector<16x44xf32>
    %180 = arith.addf %169, %179 : vector<16x44xf32>
    %c11 = arith.constant 11 : index
    %181 = memref.load %arg1[%c11] : memref<98xf32, #tpu.memory_space<smem>>
    %c60 = arith.constant 60 : index
    %182 = memref.load %arg1[%c60] : memref<98xf32, #tpu.memory_space<smem>>
    %183 = vector.broadcast %181 : f32 to vector<1x44xf32>
    %184 = arith.mulf %183, %54 : vector<1x44xf32>
    %185 = vector.broadcast %182 : f32 to vector<1x44xf32>
    %186 = arith.mulf %185, %56 : vector<1x44xf32>
    %187 = arith.addf %184, %186 : vector<1x44xf32>
    %188 = vector.extract_strided_slice %136 {offsets = [0, 4], sizes = [16, 44], strides = [1, 1]} : vector<16x50xf32> to vector<16x44xf32>
    %189 = vector.broadcast %187 : vector<1x44xf32> to vector<16x44xf32>
    %190 = arith.mulf %189, %188 : vector<16x44xf32>
    %191 = arith.addf %180, %190 : vector<16x44xf32>
    %c12 = arith.constant 12 : index
    %192 = memref.load %arg1[%c12] : memref<98xf32, #tpu.memory_space<smem>>
    %c61 = arith.constant 61 : index
    %193 = memref.load %arg1[%c61] : memref<98xf32, #tpu.memory_space<smem>>
    %194 = vector.broadcast %192 : f32 to vector<1x44xf32>
    %195 = arith.mulf %194, %54 : vector<1x44xf32>
    %196 = vector.broadcast %193 : f32 to vector<1x44xf32>
    %197 = arith.mulf %196, %56 : vector<1x44xf32>
    %198 = arith.addf %195, %197 : vector<1x44xf32>
    %199 = vector.extract_strided_slice %136 {offsets = [0, 5], sizes = [16, 44], strides = [1, 1]} : vector<16x50xf32> to vector<16x44xf32>
    %200 = vector.broadcast %198 : vector<1x44xf32> to vector<16x44xf32>
    %201 = arith.mulf %200, %199 : vector<16x44xf32>
    %202 = arith.addf %191, %201 : vector<16x44xf32>
    %c13 = arith.constant 13 : index
    %203 = memref.load %arg1[%c13] : memref<98xf32, #tpu.memory_space<smem>>
    %c62 = arith.constant 62 : index
    %204 = memref.load %arg1[%c62] : memref<98xf32, #tpu.memory_space<smem>>
    %205 = vector.broadcast %203 : f32 to vector<1x44xf32>
    %206 = arith.mulf %205, %54 : vector<1x44xf32>
    %207 = vector.broadcast %204 : f32 to vector<1x44xf32>
    %208 = arith.mulf %207, %56 : vector<1x44xf32>
    %209 = arith.addf %206, %208 : vector<1x44xf32>
    %210 = vector.extract_strided_slice %136 {offsets = [0, 6], sizes = [16, 44], strides = [1, 1]} : vector<16x50xf32> to vector<16x44xf32>
    %211 = vector.broadcast %209 : vector<1x44xf32> to vector<16x44xf32>
    %212 = arith.mulf %211, %210 : vector<16x44xf32>
    %213 = arith.addf %202, %212 : vector<16x44xf32>
    %214 = vector.extract_strided_slice %49 {offsets = [2, 0], sizes = [16, 50], strides = [1, 1]} : vector<22x50xf32> to vector<16x50xf32>
    %c14 = arith.constant 14 : index
    %215 = memref.load %arg1[%c14] : memref<98xf32, #tpu.memory_space<smem>>
    %c63 = arith.constant 63 : index
    %216 = memref.load %arg1[%c63] : memref<98xf32, #tpu.memory_space<smem>>
    %217 = vector.broadcast %215 : f32 to vector<1x44xf32>
    %218 = arith.mulf %217, %54 : vector<1x44xf32>
    %219 = vector.broadcast %216 : f32 to vector<1x44xf32>
    %220 = arith.mulf %219, %56 : vector<1x44xf32>
    %221 = arith.addf %218, %220 : vector<1x44xf32>
    %222 = vector.extract_strided_slice %214 {offsets = [0, 0], sizes = [16, 44], strides = [1, 1]} : vector<16x50xf32> to vector<16x44xf32>
    %223 = vector.broadcast %221 : vector<1x44xf32> to vector<16x44xf32>
    %224 = arith.mulf %223, %222 : vector<16x44xf32>
    %225 = arith.addf %213, %224 : vector<16x44xf32>
    %c15 = arith.constant 15 : index
    %226 = memref.load %arg1[%c15] : memref<98xf32, #tpu.memory_space<smem>>
    %c64 = arith.constant 64 : index
    %227 = memref.load %arg1[%c64] : memref<98xf32, #tpu.memory_space<smem>>
    %228 = vector.broadcast %226 : f32 to vector<1x44xf32>
    %229 = arith.mulf %228, %54 : vector<1x44xf32>
    %230 = vector.broadcast %227 : f32 to vector<1x44xf32>
    %231 = arith.mulf %230, %56 : vector<1x44xf32>
    %232 = arith.addf %229, %231 : vector<1x44xf32>
    %233 = vector.extract_strided_slice %214 {offsets = [0, 1], sizes = [16, 44], strides = [1, 1]} : vector<16x50xf32> to vector<16x44xf32>
    %234 = vector.broadcast %232 : vector<1x44xf32> to vector<16x44xf32>
    %235 = arith.mulf %234, %233 : vector<16x44xf32>
    %236 = arith.addf %225, %235 : vector<16x44xf32>
    %c16 = arith.constant 16 : index
    %237 = memref.load %arg1[%c16] : memref<98xf32, #tpu.memory_space<smem>>
    %c65 = arith.constant 65 : index
    %238 = memref.load %arg1[%c65] : memref<98xf32, #tpu.memory_space<smem>>
    %239 = vector.broadcast %237 : f32 to vector<1x44xf32>
    %240 = arith.mulf %239, %54 : vector<1x44xf32>
    %241 = vector.broadcast %238 : f32 to vector<1x44xf32>
    %242 = arith.mulf %241, %56 : vector<1x44xf32>
    %243 = arith.addf %240, %242 : vector<1x44xf32>
    %244 = vector.extract_strided_slice %214 {offsets = [0, 2], sizes = [16, 44], strides = [1, 1]} : vector<16x50xf32> to vector<16x44xf32>
    %245 = vector.broadcast %243 : vector<1x44xf32> to vector<16x44xf32>
    %246 = arith.mulf %245, %244 : vector<16x44xf32>
    %247 = arith.addf %236, %246 : vector<16x44xf32>
    %c17 = arith.constant 17 : index
    %248 = memref.load %arg1[%c17] : memref<98xf32, #tpu.memory_space<smem>>
    %c66 = arith.constant 66 : index
    %249 = memref.load %arg1[%c66] : memref<98xf32, #tpu.memory_space<smem>>
    %250 = vector.broadcast %248 : f32 to vector<1x44xf32>
    %251 = arith.mulf %250, %54 : vector<1x44xf32>
    %252 = vector.broadcast %249 : f32 to vector<1x44xf32>
    %253 = arith.mulf %252, %56 : vector<1x44xf32>
    %254 = arith.addf %251, %253 : vector<1x44xf32>
    %255 = vector.extract_strided_slice %214 {offsets = [0, 3], sizes = [16, 44], strides = [1, 1]} : vector<16x50xf32> to vector<16x44xf32>
    %256 = vector.broadcast %254 : vector<1x44xf32> to vector<16x44xf32>
    %257 = arith.mulf %256, %255 : vector<16x44xf32>
    %258 = arith.addf %247, %257 : vector<16x44xf32>
    %c18 = arith.constant 18 : index
    %259 = memref.load %arg1[%c18] : memref<98xf32, #tpu.memory_space<smem>>
    %c67 = arith.constant 67 : index
    %260 = memref.load %arg1[%c67] : memref<98xf32, #tpu.memory_space<smem>>
    %261 = vector.broadcast %259 : f32 to vector<1x44xf32>
    %262 = arith.mulf %261, %54 : vector<1x44xf32>
    %263 = vector.broadcast %260 : f32 to vector<1x44xf32>
    %264 = arith.mulf %263, %56 : vector<1x44xf32>
    %265 = arith.addf %262, %264 : vector<1x44xf32>
    %266 = vector.extract_strided_slice %214 {offsets = [0, 4], sizes = [16, 44], strides = [1, 1]} : vector<16x50xf32> to vector<16x44xf32>
    %267 = vector.broadcast %265 : vector<1x44xf32> to vector<16x44xf32>
    %268 = arith.mulf %267, %266 : vector<16x44xf32>
    %269 = arith.addf %258, %268 : vector<16x44xf32>
    %c19 = arith.constant 19 : index
    %270 = memref.load %arg1[%c19] : memref<98xf32, #tpu.memory_space<smem>>
    %c68 = arith.constant 68 : index
    %271 = memref.load %arg1[%c68] : memref<98xf32, #tpu.memory_space<smem>>
    %272 = vector.broadcast %270 : f32 to vector<1x44xf32>
    %273 = arith.mulf %272, %54 : vector<1x44xf32>
    %274 = vector.broadcast %271 : f32 to vector<1x44xf32>
    %275 = arith.mulf %274, %56 : vector<1x44xf32>
    %276 = arith.addf %273, %275 : vector<1x44xf32>
    %277 = vector.extract_strided_slice %214 {offsets = [0, 5], sizes = [16, 44], strides = [1, 1]} : vector<16x50xf32> to vector<16x44xf32>
    %278 = vector.broadcast %276 : vector<1x44xf32> to vector<16x44xf32>
    %279 = arith.mulf %278, %277 : vector<16x44xf32>
    %280 = arith.addf %269, %279 : vector<16x44xf32>
    %c20 = arith.constant 20 : index
    %281 = memref.load %arg1[%c20] : memref<98xf32, #tpu.memory_space<smem>>
    %c69 = arith.constant 69 : index
    %282 = memref.load %arg1[%c69] : memref<98xf32, #tpu.memory_space<smem>>
    %283 = vector.broadcast %281 : f32 to vector<1x44xf32>
    %284 = arith.mulf %283, %54 : vector<1x44xf32>
    %285 = vector.broadcast %282 : f32 to vector<1x44xf32>
    %286 = arith.mulf %285, %56 : vector<1x44xf32>
    %287 = arith.addf %284, %286 : vector<1x44xf32>
    %288 = vector.extract_strided_slice %214 {offsets = [0, 6], sizes = [16, 44], strides = [1, 1]} : vector<16x50xf32> to vector<16x44xf32>
    %289 = vector.broadcast %287 : vector<1x44xf32> to vector<16x44xf32>
    %290 = arith.mulf %289, %288 : vector<16x44xf32>
    %291 = arith.addf %280, %290 : vector<16x44xf32>
    %292 = vector.extract_strided_slice %49 {offsets = [3, 0], sizes = [16, 50], strides = [1, 1]} : vector<22x50xf32> to vector<16x50xf32>
    %c21 = arith.constant 21 : index
    %293 = memref.load %arg1[%c21] : memref<98xf32, #tpu.memory_space<smem>>
    %c70 = arith.constant 70 : index
    %294 = memref.load %arg1[%c70] : memref<98xf32, #tpu.memory_space<smem>>
    %295 = vector.broadcast %293 : f32 to vector<1x44xf32>
    %296 = arith.mulf %295, %54 : vector<1x44xf32>
    %297 = vector.broadcast %294 : f32 to vector<1x44xf32>
    %298 = arith.mulf %297, %56 : vector<1x44xf32>
    %299 = arith.addf %296, %298 : vector<1x44xf32>
    %300 = vector.extract_strided_slice %292 {offsets = [0, 0], sizes = [16, 44], strides = [1, 1]} : vector<16x50xf32> to vector<16x44xf32>
    %301 = vector.broadcast %299 : vector<1x44xf32> to vector<16x44xf32>
    %302 = arith.mulf %301, %300 : vector<16x44xf32>
    %303 = arith.addf %291, %302 : vector<16x44xf32>
    %c22 = arith.constant 22 : index
    %304 = memref.load %arg1[%c22] : memref<98xf32, #tpu.memory_space<smem>>
    %c71 = arith.constant 71 : index
    %305 = memref.load %arg1[%c71] : memref<98xf32, #tpu.memory_space<smem>>
    %306 = vector.broadcast %304 : f32 to vector<1x44xf32>
    %307 = arith.mulf %306, %54 : vector<1x44xf32>
    %308 = vector.broadcast %305 : f32 to vector<1x44xf32>
    %309 = arith.mulf %308, %56 : vector<1x44xf32>
    %310 = arith.addf %307, %309 : vector<1x44xf32>
    %311 = vector.extract_strided_slice %292 {offsets = [0, 1], sizes = [16, 44], strides = [1, 1]} : vector<16x50xf32> to vector<16x44xf32>
    %312 = vector.broadcast %310 : vector<1x44xf32> to vector<16x44xf32>
    %313 = arith.mulf %312, %311 : vector<16x44xf32>
    %314 = arith.addf %303, %313 : vector<16x44xf32>
    %c23 = arith.constant 23 : index
    %315 = memref.load %arg1[%c23] : memref<98xf32, #tpu.memory_space<smem>>
    %c72 = arith.constant 72 : index
    %316 = memref.load %arg1[%c72] : memref<98xf32, #tpu.memory_space<smem>>
    %317 = vector.broadcast %315 : f32 to vector<1x44xf32>
    %318 = arith.mulf %317, %54 : vector<1x44xf32>
    %319 = vector.broadcast %316 : f32 to vector<1x44xf32>
    %320 = arith.mulf %319, %56 : vector<1x44xf32>
    %321 = arith.addf %318, %320 : vector<1x44xf32>
    %322 = vector.extract_strided_slice %292 {offsets = [0, 2], sizes = [16, 44], strides = [1, 1]} : vector<16x50xf32> to vector<16x44xf32>
    %323 = vector.broadcast %321 : vector<1x44xf32> to vector<16x44xf32>
    %324 = arith.mulf %323, %322 : vector<16x44xf32>
    %325 = arith.addf %314, %324 : vector<16x44xf32>
    %c24 = arith.constant 24 : index
    %326 = memref.load %arg1[%c24] : memref<98xf32, #tpu.memory_space<smem>>
    %c73 = arith.constant 73 : index
    %327 = memref.load %arg1[%c73] : memref<98xf32, #tpu.memory_space<smem>>
    %328 = vector.broadcast %326 : f32 to vector<1x44xf32>
    %329 = arith.mulf %328, %54 : vector<1x44xf32>
    %330 = vector.broadcast %327 : f32 to vector<1x44xf32>
    %331 = arith.mulf %330, %56 : vector<1x44xf32>
    %332 = arith.addf %329, %331 : vector<1x44xf32>
    %333 = vector.extract_strided_slice %292 {offsets = [0, 3], sizes = [16, 44], strides = [1, 1]} : vector<16x50xf32> to vector<16x44xf32>
    %334 = vector.broadcast %332 : vector<1x44xf32> to vector<16x44xf32>
    %335 = arith.mulf %334, %333 : vector<16x44xf32>
    %336 = arith.addf %325, %335 : vector<16x44xf32>
    %c25 = arith.constant 25 : index
    %337 = memref.load %arg1[%c25] : memref<98xf32, #tpu.memory_space<smem>>
    %c74 = arith.constant 74 : index
    %338 = memref.load %arg1[%c74] : memref<98xf32, #tpu.memory_space<smem>>
    %339 = vector.broadcast %337 : f32 to vector<1x44xf32>
    %340 = arith.mulf %339, %54 : vector<1x44xf32>
    %341 = vector.broadcast %338 : f32 to vector<1x44xf32>
    %342 = arith.mulf %341, %56 : vector<1x44xf32>
    %343 = arith.addf %340, %342 : vector<1x44xf32>
    %344 = vector.extract_strided_slice %292 {offsets = [0, 4], sizes = [16, 44], strides = [1, 1]} : vector<16x50xf32> to vector<16x44xf32>
    %345 = vector.broadcast %343 : vector<1x44xf32> to vector<16x44xf32>
    %346 = arith.mulf %345, %344 : vector<16x44xf32>
    %347 = arith.addf %336, %346 : vector<16x44xf32>
    %c26 = arith.constant 26 : index
    %348 = memref.load %arg1[%c26] : memref<98xf32, #tpu.memory_space<smem>>
    %c75 = arith.constant 75 : index
    %349 = memref.load %arg1[%c75] : memref<98xf32, #tpu.memory_space<smem>>
    %350 = vector.broadcast %348 : f32 to vector<1x44xf32>
    %351 = arith.mulf %350, %54 : vector<1x44xf32>
    %352 = vector.broadcast %349 : f32 to vector<1x44xf32>
    %353 = arith.mulf %352, %56 : vector<1x44xf32>
    %354 = arith.addf %351, %353 : vector<1x44xf32>
    %355 = vector.extract_strided_slice %292 {offsets = [0, 5], sizes = [16, 44], strides = [1, 1]} : vector<16x50xf32> to vector<16x44xf32>
    %356 = vector.broadcast %354 : vector<1x44xf32> to vector<16x44xf32>
    %357 = arith.mulf %356, %355 : vector<16x44xf32>
    %358 = arith.addf %347, %357 : vector<16x44xf32>
    %c27 = arith.constant 27 : index
    %359 = memref.load %arg1[%c27] : memref<98xf32, #tpu.memory_space<smem>>
    %c76 = arith.constant 76 : index
    %360 = memref.load %arg1[%c76] : memref<98xf32, #tpu.memory_space<smem>>
    %361 = vector.broadcast %359 : f32 to vector<1x44xf32>
    %362 = arith.mulf %361, %54 : vector<1x44xf32>
    %363 = vector.broadcast %360 : f32 to vector<1x44xf32>
    %364 = arith.mulf %363, %56 : vector<1x44xf32>
    %365 = arith.addf %362, %364 : vector<1x44xf32>
    %366 = vector.extract_strided_slice %292 {offsets = [0, 6], sizes = [16, 44], strides = [1, 1]} : vector<16x50xf32> to vector<16x44xf32>
    %367 = vector.broadcast %365 : vector<1x44xf32> to vector<16x44xf32>
    %368 = arith.mulf %367, %366 : vector<16x44xf32>
    %369 = arith.addf %358, %368 : vector<16x44xf32>
    %370 = vector.extract_strided_slice %49 {offsets = [4, 0], sizes = [16, 50], strides = [1, 1]} : vector<22x50xf32> to vector<16x50xf32>
    %c28 = arith.constant 28 : index
    %371 = memref.load %arg1[%c28] : memref<98xf32, #tpu.memory_space<smem>>
    %c77 = arith.constant 77 : index
    %372 = memref.load %arg1[%c77] : memref<98xf32, #tpu.memory_space<smem>>
    %373 = vector.broadcast %371 : f32 to vector<1x44xf32>
    %374 = arith.mulf %373, %54 : vector<1x44xf32>
    %375 = vector.broadcast %372 : f32 to vector<1x44xf32>
    %376 = arith.mulf %375, %56 : vector<1x44xf32>
    %377 = arith.addf %374, %376 : vector<1x44xf32>
    %378 = vector.extract_strided_slice %370 {offsets = [0, 0], sizes = [16, 44], strides = [1, 1]} : vector<16x50xf32> to vector<16x44xf32>
    %379 = vector.broadcast %377 : vector<1x44xf32> to vector<16x44xf32>
    %380 = arith.mulf %379, %378 : vector<16x44xf32>
    %381 = arith.addf %369, %380 : vector<16x44xf32>
    %c29 = arith.constant 29 : index
    %382 = memref.load %arg1[%c29] : memref<98xf32, #tpu.memory_space<smem>>
    %c78 = arith.constant 78 : index
    %383 = memref.load %arg1[%c78] : memref<98xf32, #tpu.memory_space<smem>>
    %384 = vector.broadcast %382 : f32 to vector<1x44xf32>
    %385 = arith.mulf %384, %54 : vector<1x44xf32>
    %386 = vector.broadcast %383 : f32 to vector<1x44xf32>
    %387 = arith.mulf %386, %56 : vector<1x44xf32>
    %388 = arith.addf %385, %387 : vector<1x44xf32>
    %389 = vector.extract_strided_slice %370 {offsets = [0, 1], sizes = [16, 44], strides = [1, 1]} : vector<16x50xf32> to vector<16x44xf32>
    %390 = vector.broadcast %388 : vector<1x44xf32> to vector<16x44xf32>
    %391 = arith.mulf %390, %389 : vector<16x44xf32>
    %392 = arith.addf %381, %391 : vector<16x44xf32>
    %c30 = arith.constant 30 : index
    %393 = memref.load %arg1[%c30] : memref<98xf32, #tpu.memory_space<smem>>
    %c79 = arith.constant 79 : index
    %394 = memref.load %arg1[%c79] : memref<98xf32, #tpu.memory_space<smem>>
    %395 = vector.broadcast %393 : f32 to vector<1x44xf32>
    %396 = arith.mulf %395, %54 : vector<1x44xf32>
    %397 = vector.broadcast %394 : f32 to vector<1x44xf32>
    %398 = arith.mulf %397, %56 : vector<1x44xf32>
    %399 = arith.addf %396, %398 : vector<1x44xf32>
    %400 = vector.extract_strided_slice %370 {offsets = [0, 2], sizes = [16, 44], strides = [1, 1]} : vector<16x50xf32> to vector<16x44xf32>
    %401 = vector.broadcast %399 : vector<1x44xf32> to vector<16x44xf32>
    %402 = arith.mulf %401, %400 : vector<16x44xf32>
    %403 = arith.addf %392, %402 : vector<16x44xf32>
    %c31 = arith.constant 31 : index
    %404 = memref.load %arg1[%c31] : memref<98xf32, #tpu.memory_space<smem>>
    %c80 = arith.constant 80 : index
    %405 = memref.load %arg1[%c80] : memref<98xf32, #tpu.memory_space<smem>>
    %406 = vector.broadcast %404 : f32 to vector<1x44xf32>
    %407 = arith.mulf %406, %54 : vector<1x44xf32>
    %408 = vector.broadcast %405 : f32 to vector<1x44xf32>
    %409 = arith.mulf %408, %56 : vector<1x44xf32>
    %410 = arith.addf %407, %409 : vector<1x44xf32>
    %411 = vector.extract_strided_slice %370 {offsets = [0, 3], sizes = [16, 44], strides = [1, 1]} : vector<16x50xf32> to vector<16x44xf32>
    %412 = vector.broadcast %410 : vector<1x44xf32> to vector<16x44xf32>
    %413 = arith.mulf %412, %411 : vector<16x44xf32>
    %414 = arith.addf %403, %413 : vector<16x44xf32>
    %c32 = arith.constant 32 : index
    %415 = memref.load %arg1[%c32] : memref<98xf32, #tpu.memory_space<smem>>
    %c81 = arith.constant 81 : index
    %416 = memref.load %arg1[%c81] : memref<98xf32, #tpu.memory_space<smem>>
    %417 = vector.broadcast %415 : f32 to vector<1x44xf32>
    %418 = arith.mulf %417, %54 : vector<1x44xf32>
    %419 = vector.broadcast %416 : f32 to vector<1x44xf32>
    %420 = arith.mulf %419, %56 : vector<1x44xf32>
    %421 = arith.addf %418, %420 : vector<1x44xf32>
    %422 = vector.extract_strided_slice %370 {offsets = [0, 4], sizes = [16, 44], strides = [1, 1]} : vector<16x50xf32> to vector<16x44xf32>
    %423 = vector.broadcast %421 : vector<1x44xf32> to vector<16x44xf32>
    %424 = arith.mulf %423, %422 : vector<16x44xf32>
    %425 = arith.addf %414, %424 : vector<16x44xf32>
    %c33 = arith.constant 33 : index
    %426 = memref.load %arg1[%c33] : memref<98xf32, #tpu.memory_space<smem>>
    %c82 = arith.constant 82 : index
    %427 = memref.load %arg1[%c82] : memref<98xf32, #tpu.memory_space<smem>>
    %428 = vector.broadcast %426 : f32 to vector<1x44xf32>
    %429 = arith.mulf %428, %54 : vector<1x44xf32>
    %430 = vector.broadcast %427 : f32 to vector<1x44xf32>
    %431 = arith.mulf %430, %56 : vector<1x44xf32>
    %432 = arith.addf %429, %431 : vector<1x44xf32>
    %433 = vector.extract_strided_slice %370 {offsets = [0, 5], sizes = [16, 44], strides = [1, 1]} : vector<16x50xf32> to vector<16x44xf32>
    %434 = vector.broadcast %432 : vector<1x44xf32> to vector<16x44xf32>
    %435 = arith.mulf %434, %433 : vector<16x44xf32>
    %436 = arith.addf %425, %435 : vector<16x44xf32>
    %c34 = arith.constant 34 : index
    %437 = memref.load %arg1[%c34] : memref<98xf32, #tpu.memory_space<smem>>
    %c83 = arith.constant 83 : index
    %438 = memref.load %arg1[%c83] : memref<98xf32, #tpu.memory_space<smem>>
    %439 = vector.broadcast %437 : f32 to vector<1x44xf32>
    %440 = arith.mulf %439, %54 : vector<1x44xf32>
    %441 = vector.broadcast %438 : f32 to vector<1x44xf32>
    %442 = arith.mulf %441, %56 : vector<1x44xf32>
    %443 = arith.addf %440, %442 : vector<1x44xf32>
    %444 = vector.extract_strided_slice %370 {offsets = [0, 6], sizes = [16, 44], strides = [1, 1]} : vector<16x50xf32> to vector<16x44xf32>
    %445 = vector.broadcast %443 : vector<1x44xf32> to vector<16x44xf32>
    %446 = arith.mulf %445, %444 : vector<16x44xf32>
    %447 = arith.addf %436, %446 : vector<16x44xf32>
    %448 = vector.extract_strided_slice %49 {offsets = [5, 0], sizes = [16, 50], strides = [1, 1]} : vector<22x50xf32> to vector<16x50xf32>
    %c35 = arith.constant 35 : index
    %449 = memref.load %arg1[%c35] : memref<98xf32, #tpu.memory_space<smem>>
    %c84 = arith.constant 84 : index
    %450 = memref.load %arg1[%c84] : memref<98xf32, #tpu.memory_space<smem>>
    %451 = vector.broadcast %449 : f32 to vector<1x44xf32>
    %452 = arith.mulf %451, %54 : vector<1x44xf32>
    %453 = vector.broadcast %450 : f32 to vector<1x44xf32>
    %454 = arith.mulf %453, %56 : vector<1x44xf32>
    %455 = arith.addf %452, %454 : vector<1x44xf32>
    %456 = vector.extract_strided_slice %448 {offsets = [0, 0], sizes = [16, 44], strides = [1, 1]} : vector<16x50xf32> to vector<16x44xf32>
    %457 = vector.broadcast %455 : vector<1x44xf32> to vector<16x44xf32>
    %458 = arith.mulf %457, %456 : vector<16x44xf32>
    %459 = arith.addf %447, %458 : vector<16x44xf32>
    %c36 = arith.constant 36 : index
    %460 = memref.load %arg1[%c36] : memref<98xf32, #tpu.memory_space<smem>>
    %c85 = arith.constant 85 : index
    %461 = memref.load %arg1[%c85] : memref<98xf32, #tpu.memory_space<smem>>
    %462 = vector.broadcast %460 : f32 to vector<1x44xf32>
    %463 = arith.mulf %462, %54 : vector<1x44xf32>
    %464 = vector.broadcast %461 : f32 to vector<1x44xf32>
    %465 = arith.mulf %464, %56 : vector<1x44xf32>
    %466 = arith.addf %463, %465 : vector<1x44xf32>
    %467 = vector.extract_strided_slice %448 {offsets = [0, 1], sizes = [16, 44], strides = [1, 1]} : vector<16x50xf32> to vector<16x44xf32>
    %468 = vector.broadcast %466 : vector<1x44xf32> to vector<16x44xf32>
    %469 = arith.mulf %468, %467 : vector<16x44xf32>
    %470 = arith.addf %459, %469 : vector<16x44xf32>
    %c37 = arith.constant 37 : index
    %471 = memref.load %arg1[%c37] : memref<98xf32, #tpu.memory_space<smem>>
    %c86 = arith.constant 86 : index
    %472 = memref.load %arg1[%c86] : memref<98xf32, #tpu.memory_space<smem>>
    %473 = vector.broadcast %471 : f32 to vector<1x44xf32>
    %474 = arith.mulf %473, %54 : vector<1x44xf32>
    %475 = vector.broadcast %472 : f32 to vector<1x44xf32>
    %476 = arith.mulf %475, %56 : vector<1x44xf32>
    %477 = arith.addf %474, %476 : vector<1x44xf32>
    %478 = vector.extract_strided_slice %448 {offsets = [0, 2], sizes = [16, 44], strides = [1, 1]} : vector<16x50xf32> to vector<16x44xf32>
    %479 = vector.broadcast %477 : vector<1x44xf32> to vector<16x44xf32>
    %480 = arith.mulf %479, %478 : vector<16x44xf32>
    %481 = arith.addf %470, %480 : vector<16x44xf32>
    %c38 = arith.constant 38 : index
    %482 = memref.load %arg1[%c38] : memref<98xf32, #tpu.memory_space<smem>>
    %c87 = arith.constant 87 : index
    %483 = memref.load %arg1[%c87] : memref<98xf32, #tpu.memory_space<smem>>
    %484 = vector.broadcast %482 : f32 to vector<1x44xf32>
    %485 = arith.mulf %484, %54 : vector<1x44xf32>
    %486 = vector.broadcast %483 : f32 to vector<1x44xf32>
    %487 = arith.mulf %486, %56 : vector<1x44xf32>
    %488 = arith.addf %485, %487 : vector<1x44xf32>
    %489 = vector.extract_strided_slice %448 {offsets = [0, 3], sizes = [16, 44], strides = [1, 1]} : vector<16x50xf32> to vector<16x44xf32>
    %490 = vector.broadcast %488 : vector<1x44xf32> to vector<16x44xf32>
    %491 = arith.mulf %490, %489 : vector<16x44xf32>
    %492 = arith.addf %481, %491 : vector<16x44xf32>
    %c39 = arith.constant 39 : index
    %493 = memref.load %arg1[%c39] : memref<98xf32, #tpu.memory_space<smem>>
    %c88 = arith.constant 88 : index
    %494 = memref.load %arg1[%c88] : memref<98xf32, #tpu.memory_space<smem>>
    %495 = vector.broadcast %493 : f32 to vector<1x44xf32>
    %496 = arith.mulf %495, %54 : vector<1x44xf32>
    %497 = vector.broadcast %494 : f32 to vector<1x44xf32>
    %498 = arith.mulf %497, %56 : vector<1x44xf32>
    %499 = arith.addf %496, %498 : vector<1x44xf32>
    %500 = vector.extract_strided_slice %448 {offsets = [0, 4], sizes = [16, 44], strides = [1, 1]} : vector<16x50xf32> to vector<16x44xf32>
    %501 = vector.broadcast %499 : vector<1x44xf32> to vector<16x44xf32>
    %502 = arith.mulf %501, %500 : vector<16x44xf32>
    %503 = arith.addf %492, %502 : vector<16x44xf32>
    %c40 = arith.constant 40 : index
    %504 = memref.load %arg1[%c40] : memref<98xf32, #tpu.memory_space<smem>>
    %c89 = arith.constant 89 : index
    %505 = memref.load %arg1[%c89] : memref<98xf32, #tpu.memory_space<smem>>
    %506 = vector.broadcast %504 : f32 to vector<1x44xf32>
    %507 = arith.mulf %506, %54 : vector<1x44xf32>
    %508 = vector.broadcast %505 : f32 to vector<1x44xf32>
    %509 = arith.mulf %508, %56 : vector<1x44xf32>
    %510 = arith.addf %507, %509 : vector<1x44xf32>
    %511 = vector.extract_strided_slice %448 {offsets = [0, 5], sizes = [16, 44], strides = [1, 1]} : vector<16x50xf32> to vector<16x44xf32>
    %512 = vector.broadcast %510 : vector<1x44xf32> to vector<16x44xf32>
    %513 = arith.mulf %512, %511 : vector<16x44xf32>
    %514 = arith.addf %503, %513 : vector<16x44xf32>
    %c41 = arith.constant 41 : index
    %515 = memref.load %arg1[%c41] : memref<98xf32, #tpu.memory_space<smem>>
    %c90 = arith.constant 90 : index
    %516 = memref.load %arg1[%c90] : memref<98xf32, #tpu.memory_space<smem>>
    %517 = vector.broadcast %515 : f32 to vector<1x44xf32>
    %518 = arith.mulf %517, %54 : vector<1x44xf32>
    %519 = vector.broadcast %516 : f32 to vector<1x44xf32>
    %520 = arith.mulf %519, %56 : vector<1x44xf32>
    %521 = arith.addf %518, %520 : vector<1x44xf32>
    %522 = vector.extract_strided_slice %448 {offsets = [0, 6], sizes = [16, 44], strides = [1, 1]} : vector<16x50xf32> to vector<16x44xf32>
    %523 = vector.broadcast %521 : vector<1x44xf32> to vector<16x44xf32>
    %524 = arith.mulf %523, %522 : vector<16x44xf32>
    %525 = arith.addf %514, %524 : vector<16x44xf32>
    %526 = vector.extract_strided_slice %49 {offsets = [6, 0], sizes = [16, 50], strides = [1, 1]} : vector<22x50xf32> to vector<16x50xf32>
    %c42 = arith.constant 42 : index
    %527 = memref.load %arg1[%c42] : memref<98xf32, #tpu.memory_space<smem>>
    %c91 = arith.constant 91 : index
    %528 = memref.load %arg1[%c91] : memref<98xf32, #tpu.memory_space<smem>>
    %529 = vector.broadcast %527 : f32 to vector<1x44xf32>
    %530 = arith.mulf %529, %54 : vector<1x44xf32>
    %531 = vector.broadcast %528 : f32 to vector<1x44xf32>
    %532 = arith.mulf %531, %56 : vector<1x44xf32>
    %533 = arith.addf %530, %532 : vector<1x44xf32>
    %534 = vector.extract_strided_slice %526 {offsets = [0, 0], sizes = [16, 44], strides = [1, 1]} : vector<16x50xf32> to vector<16x44xf32>
    %535 = vector.broadcast %533 : vector<1x44xf32> to vector<16x44xf32>
    %536 = arith.mulf %535, %534 : vector<16x44xf32>
    %537 = arith.addf %525, %536 : vector<16x44xf32>
    %c43 = arith.constant 43 : index
    %538 = memref.load %arg1[%c43] : memref<98xf32, #tpu.memory_space<smem>>
    %c92 = arith.constant 92 : index
    %539 = memref.load %arg1[%c92] : memref<98xf32, #tpu.memory_space<smem>>
    %540 = vector.broadcast %538 : f32 to vector<1x44xf32>
    %541 = arith.mulf %540, %54 : vector<1x44xf32>
    %542 = vector.broadcast %539 : f32 to vector<1x44xf32>
    %543 = arith.mulf %542, %56 : vector<1x44xf32>
    %544 = arith.addf %541, %543 : vector<1x44xf32>
    %545 = vector.extract_strided_slice %526 {offsets = [0, 1], sizes = [16, 44], strides = [1, 1]} : vector<16x50xf32> to vector<16x44xf32>
    %546 = vector.broadcast %544 : vector<1x44xf32> to vector<16x44xf32>
    %547 = arith.mulf %546, %545 : vector<16x44xf32>
    %548 = arith.addf %537, %547 : vector<16x44xf32>
    %c44 = arith.constant 44 : index
    %549 = memref.load %arg1[%c44] : memref<98xf32, #tpu.memory_space<smem>>
    %c93 = arith.constant 93 : index
    %550 = memref.load %arg1[%c93] : memref<98xf32, #tpu.memory_space<smem>>
    %551 = vector.broadcast %549 : f32 to vector<1x44xf32>
    %552 = arith.mulf %551, %54 : vector<1x44xf32>
    %553 = vector.broadcast %550 : f32 to vector<1x44xf32>
    %554 = arith.mulf %553, %56 : vector<1x44xf32>
    %555 = arith.addf %552, %554 : vector<1x44xf32>
    %556 = vector.extract_strided_slice %526 {offsets = [0, 2], sizes = [16, 44], strides = [1, 1]} : vector<16x50xf32> to vector<16x44xf32>
    %557 = vector.broadcast %555 : vector<1x44xf32> to vector<16x44xf32>
    %558 = arith.mulf %557, %556 : vector<16x44xf32>
    %559 = arith.addf %548, %558 : vector<16x44xf32>
    %c45 = arith.constant 45 : index
    %560 = memref.load %arg1[%c45] : memref<98xf32, #tpu.memory_space<smem>>
    %c94 = arith.constant 94 : index
    %561 = memref.load %arg1[%c94] : memref<98xf32, #tpu.memory_space<smem>>
    %562 = vector.broadcast %560 : f32 to vector<1x44xf32>
    %563 = arith.mulf %562, %54 : vector<1x44xf32>
    %564 = vector.broadcast %561 : f32 to vector<1x44xf32>
    %565 = arith.mulf %564, %56 : vector<1x44xf32>
    %566 = arith.addf %563, %565 : vector<1x44xf32>
    %567 = vector.extract_strided_slice %526 {offsets = [0, 3], sizes = [16, 44], strides = [1, 1]} : vector<16x50xf32> to vector<16x44xf32>
    %568 = vector.broadcast %566 : vector<1x44xf32> to vector<16x44xf32>
    %569 = arith.mulf %568, %567 : vector<16x44xf32>
    %570 = arith.addf %559, %569 : vector<16x44xf32>
    %c46 = arith.constant 46 : index
    %571 = memref.load %arg1[%c46] : memref<98xf32, #tpu.memory_space<smem>>
    %c95 = arith.constant 95 : index
    %572 = memref.load %arg1[%c95] : memref<98xf32, #tpu.memory_space<smem>>
    %573 = vector.broadcast %571 : f32 to vector<1x44xf32>
    %574 = arith.mulf %573, %54 : vector<1x44xf32>
    %575 = vector.broadcast %572 : f32 to vector<1x44xf32>
    %576 = arith.mulf %575, %56 : vector<1x44xf32>
    %577 = arith.addf %574, %576 : vector<1x44xf32>
    %578 = vector.extract_strided_slice %526 {offsets = [0, 4], sizes = [16, 44], strides = [1, 1]} : vector<16x50xf32> to vector<16x44xf32>
    %579 = vector.broadcast %577 : vector<1x44xf32> to vector<16x44xf32>
    %580 = arith.mulf %579, %578 : vector<16x44xf32>
    %581 = arith.addf %570, %580 : vector<16x44xf32>
    %c47 = arith.constant 47 : index
    %582 = memref.load %arg1[%c47] : memref<98xf32, #tpu.memory_space<smem>>
    %c96 = arith.constant 96 : index
    %583 = memref.load %arg1[%c96] : memref<98xf32, #tpu.memory_space<smem>>
    %584 = vector.broadcast %582 : f32 to vector<1x44xf32>
    %585 = arith.mulf %584, %54 : vector<1x44xf32>
    %586 = vector.broadcast %583 : f32 to vector<1x44xf32>
    %587 = arith.mulf %586, %56 : vector<1x44xf32>
    %588 = arith.addf %585, %587 : vector<1x44xf32>
    %589 = vector.extract_strided_slice %526 {offsets = [0, 5], sizes = [16, 44], strides = [1, 1]} : vector<16x50xf32> to vector<16x44xf32>
    %590 = vector.broadcast %588 : vector<1x44xf32> to vector<16x44xf32>
    %591 = arith.mulf %590, %589 : vector<16x44xf32>
    %592 = arith.addf %581, %591 : vector<16x44xf32>
    %c48 = arith.constant 48 : index
    %593 = memref.load %arg1[%c48] : memref<98xf32, #tpu.memory_space<smem>>
    %c97 = arith.constant 97 : index
    %594 = memref.load %arg1[%c97] : memref<98xf32, #tpu.memory_space<smem>>
    %595 = vector.broadcast %593 : f32 to vector<1x44xf32>
    %596 = arith.mulf %595, %54 : vector<1x44xf32>
    %597 = vector.broadcast %594 : f32 to vector<1x44xf32>
    %598 = arith.mulf %597, %56 : vector<1x44xf32>
    %599 = arith.addf %596, %598 : vector<1x44xf32>
    %600 = vector.extract_strided_slice %526 {offsets = [0, 6], sizes = [16, 44], strides = [1, 1]} : vector<16x50xf32> to vector<16x44xf32>
    %601 = vector.broadcast %599 : vector<1x44xf32> to vector<16x44xf32>
    %602 = arith.mulf %601, %600 : vector<16x44xf32>
    %603 = arith.addf %592, %602 : vector<16x44xf32>
    %c0_11 = arith.constant 0 : index
    %604 = memref.load %arg2[%c0_11] : memref<2xf32, #tpu.memory_space<smem>>
    %c1_12 = arith.constant 1 : index
    %605 = memref.load %arg2[%c1_12] : memref<2xf32, #tpu.memory_space<smem>>
    %606 = vector.extract_strided_slice %603 {offsets = [0, 0], sizes = [16, 16], strides = [1, 1]} : vector<16x44xf32> to vector<16x16xf32>
    %607 = vector.extract_strided_slice %603 {offsets = [0, 22], sizes = [16, 16], strides = [1, 1]} : vector<16x44xf32> to vector<16x16xf32>
    %608 = arith.addf %606, %607 : vector<16x16xf32>
    %609 = vector.broadcast %604 : f32 to vector<16x16xf32>
    %610 = arith.mulf %608, %609 : vector<16x16xf32>
    %611 = vector.broadcast %605 : f32 to vector<16x16xf32>
    %612 = arith.addf %610, %611 : vector<16x16xf32>
    %613 = arith.negf %612 : vector<16x16xf32>
    %614 = math.exp %613 : vector<16x16xf32>
    %cst_13 = arith.constant 1.000000e+00 : f32
    %615 = vector.broadcast %cst_13 : f32 to vector<16x16xf32>
    %616 = arith.addf %615, %614 : vector<16x16xf32>
    %617 = arith.divf %615, %616 : vector<16x16xf32>
    %618 = vector.extract_strided_slice %617 {offsets = [0, 0], sizes = [1, 16], strides = [1, 1]} : vector<16x16xf32> to vector<1x16xf32>
    %619 = vector.extract_strided_slice %617 {offsets = [1, 0], sizes = [1, 16], strides = [1, 1]} : vector<16x16xf32> to vector<1x16xf32>
    %620 = vector.extract_strided_slice %617 {offsets = [2, 0], sizes = [1, 16], strides = [1, 1]} : vector<16x16xf32> to vector<1x16xf32>
    %621 = vector.extract_strided_slice %617 {offsets = [3, 0], sizes = [1, 16], strides = [1, 1]} : vector<16x16xf32> to vector<1x16xf32>
    %622 = vector.extract_strided_slice %617 {offsets = [4, 0], sizes = [1, 16], strides = [1, 1]} : vector<16x16xf32> to vector<1x16xf32>
    %623 = vector.extract_strided_slice %617 {offsets = [5, 0], sizes = [1, 16], strides = [1, 1]} : vector<16x16xf32> to vector<1x16xf32>
    %624 = vector.extract_strided_slice %617 {offsets = [6, 0], sizes = [1, 16], strides = [1, 1]} : vector<16x16xf32> to vector<1x16xf32>
    %625 = vector.extract_strided_slice %617 {offsets = [7, 0], sizes = [1, 16], strides = [1, 1]} : vector<16x16xf32> to vector<1x16xf32>
    %626 = vector.extract_strided_slice %617 {offsets = [8, 0], sizes = [1, 16], strides = [1, 1]} : vector<16x16xf32> to vector<1x16xf32>
    %627 = vector.extract_strided_slice %617 {offsets = [9, 0], sizes = [1, 16], strides = [1, 1]} : vector<16x16xf32> to vector<1x16xf32>
    %628 = vector.extract_strided_slice %617 {offsets = [10, 0], sizes = [1, 16], strides = [1, 1]} : vector<16x16xf32> to vector<1x16xf32>
    %629 = vector.extract_strided_slice %617 {offsets = [11, 0], sizes = [1, 16], strides = [1, 1]} : vector<16x16xf32> to vector<1x16xf32>
    %630 = vector.extract_strided_slice %617 {offsets = [12, 0], sizes = [1, 16], strides = [1, 1]} : vector<16x16xf32> to vector<1x16xf32>
    %631 = vector.extract_strided_slice %617 {offsets = [13, 0], sizes = [1, 16], strides = [1, 1]} : vector<16x16xf32> to vector<1x16xf32>
    %632 = vector.extract_strided_slice %617 {offsets = [14, 0], sizes = [1, 16], strides = [1, 1]} : vector<16x16xf32> to vector<1x16xf32>
    %633 = vector.extract_strided_slice %617 {offsets = [15, 0], sizes = [1, 16], strides = [1, 1]} : vector<16x16xf32> to vector<1x16xf32>
    %634 = tpu.concatenate %618, %619, %620, %621, %622, %623, %624, %625, %626, %627, %628, %629, %630, %631, %632, %633 in 1 : vector<1x16xf32>, vector<1x16xf32>, vector<1x16xf32>, vector<1x16xf32>, vector<1x16xf32>, vector<1x16xf32>, vector<1x16xf32>, vector<1x16xf32>, vector<1x16xf32>, vector<1x16xf32>, vector<1x16xf32>, vector<1x16xf32>, vector<1x16xf32>, vector<1x16xf32>, vector<1x16xf32>, vector<1x16xf32> -> vector<1x256xf32>
    %c0_14 = arith.constant 0 : index
    %c0_15 = arith.constant 0 : index
    %c0_16 = arith.constant 0 : index
    %635 = vector.load %arg3[%c0_14, %c0_15, %c0_16] : memref<1x4x256xf32, #tpu.memory_space<vmem>>, vector<1x4x256xf32>
    %636 = vector.shape_cast %635 : vector<1x4x256xf32> to vector<4x256xf32>
    %637 = vector.broadcast %634 : vector<1x256xf32> to vector<4x256xf32>
    %638 = arith.mulf %636, %637 : vector<4x256xf32>
    %c0_17 = arith.constant 0 : index
    %c0_18 = arith.constant 0 : index
    %c0_19 = arith.constant 0 : index
    %639 = vector.load %arg4[%c0_17, %c0_18, %c0_19] : memref<1x4x256xf32, #tpu.memory_space<vmem>>, vector<1x4x256xf32>
    %640 = vector.shape_cast %639 : vector<1x4x256xf32> to vector<4x256xf32>
    %641 = vector.shape_cast %638 : vector<4x256xf32> to vector<1x4x256xf32>
    tpu.vector_store %arg4[%c0_17, %c0_18, %c0_19], %641 {strides = array<i32>} : memref<1x4x256xf32, #tpu.memory_space<vmem>>, vector<1x4x256xf32>,
    return
  }
  func.func @transform_0(%arg0: i32) -> i32 {
    %c0_i32 = arith.constant 0 : i32
    %c0_i32_0 = arith.constant 0 : i32
    return %c0_i32 : i32
  }
  func.func @transform_1(%arg0: i32) -> i32 {
    %c0_i32 = arith.constant 0 : i32
    %c0_i32_0 = arith.constant 0 : i32
    return %c0_i32 : i32
  }
  func.func @transform_2(%arg0: i32) -> (i32, i32, i32) {
    %c0_i32 = arith.constant 0 : i32
    %c0_i32_0 = arith.constant 0 : i32
    %c0_i32_1 = arith.constant 0 : i32
    return %arg0, %c0_i32, %c0_i32_0 : i32, i32, i32
  }
  func.func @transform_3(%arg0: i32) -> (i32, i32, i32) {
    %c0_i32 = arith.constant 0 : i32
    %c0_i32_0 = arith.constant 0 : i32
    %c0_i32_1 = arith.constant 0 : i32
    return %arg0, %c0_i32, %c0_i32_0 : i32, i32, i32
  }
}

</mosaic_0001>

<llo_original>
// kernel: tpu_custom_call.1
$region0: #{tpu_custom_call.1}
  #allocation0 [shape = 'u32[]', space=smem, size = 0x4, offset = 0x4, fixed_abs, tag = 'smem constant byte address 0x4 - core index']
  #allocation1 [shape = 'u32[72,128]{1,0:T(1,128)}', space=vmem, size = 0x9000, scoped, tag = 'internal scratch']
  %s0 = inlined_call_operand.hbm [shape: f32[98], index: 0, kind: input, shape index: {}]
  %s1 = inlined_call_operand.hbm [shape: f32[2], index: 1, kind: input, shape index: {}]
  %s2 = inlined_call_operand.hbm [shape: f32[2,4,256], index: 2, kind: input, shape index: {}]
  %s3 = inlined_call_operand.hbm [shape: f32[2,4,256], index: 3, kind: output, shape index: {}]
  %s4 = sld [smem:[#allocation0]]
  $region57: #{tpu_custom_call.1} parent=0
    _
  %s6 = ssub.s32 1, %s4
  %s7 = scalar_select 0, %s6, %s4
  $region1: #{tpu_custom_call.1} parent=0
    #allocation2 [shape = 'u8[512]{0}', space=smem, size = 0x200, scoped, tag = 'input window, operand 0, single buffered']
    #allocation3 [shape = 's32[2]{0}', space=sflag, size = 0x8, scoped, tag = 'scoped memory for tpu_custom_call.1']
    #allocation4 [shape = 's32[2]{0}', space=sflag, size = 0x8, scoped, tag = 'scoped memory for tpu_custom_call.1']
    #allocation5 [shape = 's32[2]{0}', space=sflag, size = 0x8, scoped, tag = 'scoped memory for tpu_custom_call.1']
    #allocation6 [shape = 'u8[512]{0}', space=smem, size = 0x200, scoped, tag = 'input window, operand 1, single buffered']
    #allocation7 [shape = 's32[1]{0}', space=sflag, size = 0x4, scoped, tag = 'scoped memory for tpu_custom_call.1']
    #allocation8 [shape = 'u8[8192]{0}', space=vmem, size = 0x2000, scoped, tag = 'input window, operand 2']
    #allocation9 [shape = 'u8[8192]{0}', space=vmem, size = 0x2000, scoped, tag = 'output window, operand 0']
    %8 = vsyncpa [#allocation5], 0
    %9 = vsyncpa [#allocation7], 0
    %10 = vsyncpa [#allocation3], 0
    %s11 = scalar_lea.sflag [#allocation3], 1
    %12 = vsyncpa %s11, 0
    %13 = vsyncpa [#allocation4], 0
    %s14 = scalar_lea.sflag [#allocation4], 1
    %15 = vsyncpa %s14, 0
    loop: start=0, step=1, limit=4
    $region2: #{tpu_custom_call.1} parent=1 // loop_pre_header
      _
    $region3: #{tpu_custom_call.1} parent=1 // loop_header
      %s17 = sphi 0, %s21
      %p18 = scmp.ge.s32.totalorder %s17, 4
      %s25 = sphi 0, %s25
      %s27 = sphi 0, %s25
      %s28 = sphi 0, %s27
      %s42 = sphi 0, %s28
      %s46 = sphi 0, %s46
      %s48 = sphi 0, %s46
      %s49 = sphi 0, %s48
      %s63 = sphi 0, %s49
      %s69 = sphi 0, %s71
      %s72 = sphi 0, %s69
      %s73 = sphi 0, %s72
      %s89 = sphi 0, %s73
      %s95 = sphi 0, %s97
      %s98 = sphi 0, %s95
      %s99 = sphi 0, %s98
      %s115 = sphi 0, %s99
    $region4: #{tpu_custom_call.1} parent=1 // loop_header_branch
      %20 = sbr.rel (%p18) target = $region8
    $region5: #{tpu_custom_call.1} parent=1 // loop_body
      %s22 = ssub.s32 %s17, 1
      %s23 = ssub.s32 %s17, 2
      %s24 = sadd.s32 %s17, 1
      %s26 = sadd.s32 %s25, 1
      %p29 = scmp.eq.s32.totalorder %s17, 1
      %p30 = scmp.ne.s32.totalorder %s25, %s27
      %p31 = scmp.eq.s32.totalorder %s17, 0
      %p32 = por %p30, %p31
      %p33 = scmp.ne.s32.totalorder %s25, %s27
      %p34 = scmp.eq.s32.totalorder %s22, 1
      %p35 = por %p33, %p34
      %p36 = scmp.ne.s32.totalorder %s27, %s28
      %p37 = scmp.eq.s32.totalorder %s22, 0
      %p38 = por %p36, %p37
      %p39 = scmp.ne.s32.totalorder %s27, %s28
      %p40 = scmp.eq.s32.totalorder %s23, 1
      %p41 = por %p39, %p40
      %p43 = scmp.ne.s32.totalorder %s28, %s42
      %p44 = scmp.eq.s32.totalorder %s23, 0
      %p45 = por %p43, %p44
      %s47 = sadd.s32 %s46, 1
      %p50 = scmp.eq.s32.totalorder %s17, 1
      %p51 = scmp.ne.s32.totalorder %s46, %s48
      %p52 = scmp.eq.s32.totalorder %s17, 0
      %p53 = por %p51, %p52
      %p54 = scmp.ne.s32.totalorder %s46, %s48
      %p55 = scmp.eq.s32.totalorder %s22, 1
      %p56 = por %p54, %p55
      %p57 = scmp.ne.s32.totalorder %s48, %s49
      %p58 = scmp.eq.s32.totalorder %s22, 0
      %p59 = por %p57, %p58
      %p60 = scmp.ne.s32.totalorder %s48, %s49
      %p61 = scmp.eq.s32.totalorder %s23, 1
      %p62 = por %p60, %p61
      %p64 = scmp.ne.s32.totalorder %s49, %s63
      %p65 = scmp.eq.s32.totalorder %s23, 0
      %p66 = por %p64, %p65
      %s67 = ssub.s32 %s17, %s24
      %p68 = scmp.eq.s32.totalorder %s67, 0
      %s70 = sadd.s32 %s69, 1
      %s71 = scalar_select %p68, %s69, %s70
      %p74 = pneg %p68
      %p75 = scmp.eq.s32.totalorder %s17, 1
      %p76 = por %p74, %p75
      %p77 = scmp.ne.s32.totalorder %s69, %s72
      %p78 = scmp.eq.s32.totalorder %s17, 0
      %p79 = por %p77, %p78
      %p80 = scmp.ne.s32.totalorder %s69, %s72
      %p81 = scmp.eq.s32.totalorder %s22, 1
      %p82 = por %p80, %p81
      %p83 = scmp.ne.s32.totalorder %s72, %s73
      %p84 = scmp.eq.s32.totalorder %s22, 0
      %p85 = por %p83, %p84
      %p86 = scmp.ne.s32.totalorder %s72, %s73
      %p87 = scmp.eq.s32.totalorder %s23, 1
      %p88 = por %p86, %p87
      %p90 = scmp.ne.s32.totalorder %s73, %s89
      %p91 = scmp.eq.s32.totalorder %s23, 0
      %p92 = por %p90, %p91
      %s93 = ssub.s32 %s17, %s24
      %p94 = scmp.eq.s32.totalorder %s93, 0
      %s96 = sadd.s32 %s95, 1
      %s97 = scalar_select %p94, %s95, %s96
      %p100 = pneg %p94
      %p101 = scmp.eq.s32.totalorder %s17, 1
      %p102 = por %p100, %p101
      %p103 = scmp.ne.s32.totalorder %s95, %s98
      %p104 = scmp.eq.s32.totalorder %s17, 0
      %p105 = por %p103, %p104
      %p106 = scmp.ne.s32.totalorder %s95, %s98
      %p107 = scmp.eq.s32.totalorder %s22, 1
      %p108 = por %p106, %p107
      %p109 = scmp.ne.s32.totalorder %s98, %s99
      %p110 = scmp.eq.s32.totalorder %s22, 0
      %p111 = por %p109, %p110
      %p112 = scmp.ne.s32.totalorder %s98, %s99
      %p113 = scmp.eq.s32.totalorder %s23, 1
      %p114 = por %p112, %p113
      %p116 = scmp.ne.s32.totalorder %s99, %s115
      %p117 = scmp.eq.s32.totalorder %s23, 0
      %p118 = por %p116, %p117
      %p119 = scmp.le.s32.totalorder 1, %s17
      %p120 = scmp.lt.s32.totalorder %s17, 3
      %p121 = pnand %p119, %p120
      %p122 = pneg %p121
      // Predicated region
      $region9: #{tpu_custom_call.1} parent=5 // pred_check
        _
      $region10: #{tpu_custom_call.1} parent=5 // pred_check_branch
        %124 = sbr.rel (%p121) target = $region12
      $region11: #{tpu_custom_call.1} parent=5 // pred_region
        %s125 = ssub.s32 %s17, 1
        // Predicated region
        $region13: #{tpu_custom_call.1} parent=11 // pred_check
          %p126 = pneg %p38
        $region14: #{tpu_custom_call.1} parent=11 // pred_check_branch
          %128 = sbr.rel (%p126) target = $region16
        $region15: #{tpu_custom_call.1} parent=11 // pred_region
          %130 = vsyncadd [#allocation5], 0
          %s132 = sshll.u32 %s0, 4
          %s133 = int_to_ptr.hbm [resolvable:$true] %s132
          %135 = dma.hbm_to_smem %s133, 16, [#allocation2], [#allocation5]
        $region16: #{tpu_custom_call.1} parent=11 // pred_fallthru
          _
        // Predicated region
        $region17: #{tpu_custom_call.1} parent=11 // pred_check
          %p136 = pneg %p59
        $region18: #{tpu_custom_call.1} parent=11 // pred_check_branch
          %138 = sbr.rel (%p136) target = $region20
        $region19: #{tpu_custom_call.1} parent=11 // pred_region
          %140 = vsyncadd [#allocation7], 0
          %s142 = sshll.u32 %s1, 4
          %s143 = int_to_ptr.hbm [resolvable:$true] %s142
          %145 = dma.hbm_to_smem %s143, 16, [#allocation6], [#allocation7]
        $region20: #{tpu_custom_call.1} parent=11 // pred_fallthru
          _
      $region12: #{tpu_custom_call.1} parent=5 // pred_fallthru
        _
      %p146 = scmp.lt.s32.totalorder %s17, 2
      // Predicated region
      $region21: #{tpu_custom_call.1} parent=5 // pred_check
        %p147 = pneg %p146
      $region22: #{tpu_custom_call.1} parent=5 // pred_check_branch
        %149 = sbr.rel (%p147) target = $region24
      $region23: #{tpu_custom_call.1} parent=5 // pred_region
        // Predicated region
        $region25: #{tpu_custom_call.1} parent=23 // pred_check
          %p150 = pneg %p79
        $region26: #{tpu_custom_call.1} parent=23 // pred_check_branch
          %152 = sbr.rel (%p150) target = $region28
        $region27: #{tpu_custom_call.1} parent=23 // pred_region
          %s153 = sand.u32 %s69, 1
          %s154 = scalar_lea.sflag [#allocation3], %s153
          %s155 = sand.u32 %s69, 1
          %s156 = smul.addr %s155, 8
          %s157 = scalar_lea.vmem [#allocation8], %s156
          %159 = vsyncadd %s154, 0
          %s160 = smul.addr %s17, 2
          %s161 = smul.addr %s160, 4
          %s162 = scalar_lea.hbm %s2, %s161
          %s164 = sshll.u32 %s162, 4
          %s165 = int_to_ptr.hbm [resolvable:$true] %s164
          %s166 = sshll.u32 %s157, 4
          %s167 = int_to_ptr.vmem [resolvable:$true] %s166
          %169 = dma.hbm_to_vmem [thread:$0]  %s165, 128, %s167, %s154
        $region28: #{tpu_custom_call.1} parent=23 // pred_fallthru
          _
      $region24: #{tpu_custom_call.1} parent=5 // pred_fallthru
        _
      %p170 = scmp.le.s32.totalorder 1, %s17
      %p171 = scmp.lt.s32.totalorder %s17, 3
      %p172 = pnand %p170, %p171
      %p173 = pneg %p172
      // Predicated region
      $region29: #{tpu_custom_call.1} parent=5 // pred_check
        _
      $region30: #{tpu_custom_call.1} parent=5 // pred_check_branch
        %175 = sbr.rel (%p172) target = $region32
      $region31: #{tpu_custom_call.1} parent=5 // pred_region
        %s176 = ssub.s32 %s17, 1
        // Predicated region
        $region33: #{tpu_custom_call.1} parent=31 // pred_check
          %p177 = pneg %p38
        $region34: #{tpu_custom_call.1} parent=31 // pred_check_branch
          %179 = sbr.rel (%p177) target = $region36
        $region35: #{tpu_custom_call.1} parent=31 // pred_region
          %181 = dma.done [#allocation5], 16
        $region36: #{tpu_custom_call.1} parent=31 // pred_fallthru
          _
        // Predicated region
        $region37: #{tpu_custom_call.1} parent=31 // pred_check
          %p182 = pneg %p59
        $region38: #{tpu_custom_call.1} parent=31 // pred_check_branch
          %184 = sbr.rel (%p182) target = $region40
        $region39: #{tpu_custom_call.1} parent=31 // pred_region
          %186 = dma.done [#allocation7], 16
        $region40: #{tpu_custom_call.1} parent=31 // pred_fallthru
          _
        %s187 = sand.u32 %s72, 1
        %s188 = scalar_lea.sflag [#allocation3], %s187
        %s189 = sand.u32 %s72, 1
        %s190 = smul.addr %s189, 8
        %s191 = scalar_lea.vmem [#allocation8], %s190
        // Predicated region
        $region41: #{tpu_custom_call.1} parent=31 // pred_check
          %p192 = pneg %p85
        $region42: #{tpu_custom_call.1} parent=31 // pred_check_branch
          %194 = sbr.rel (%p192) target = $region44
        $region43: #{tpu_custom_call.1} parent=31 // pred_region
          %196 = dma.done %s188, 128
        $region44: #{tpu_custom_call.1} parent=31 // pred_fallthru
          _
        %197 = sfence
        %p198 = pneg %p38
        %p199 = pneg %p35
        %p200 = pneg %p59
        %p201 = pneg %p56
        %s202 = sand.u32 %s72, 1
        %s203 = scalar_lea.sflag [#allocation3], %s202
        %s204 = sand.u32 %s72, 1
        %s205 = smul.addr %s204, 8
        %s206 = scalar_lea.vmem [#allocation8], %s205
        %p207 = pneg %p85
        %p208 = pneg %p82
        %p209 = pneg %p111
        %p210 = pneg %p108
        %s211 = sand.u32 %s98, 1
        %s212 = scalar_lea.sflag [#allocation4], %s211
        %s213 = sand.u32 %s98, 1
        %s214 = smul.addr %s213, 8
        %s215 = scalar_lea.vmem [#allocation9], %s214
        %v216 = vld [vmem:[%s191] sm:$0xff]
        %218 = vst [vmem:[#allocation1] ss:$2 sm:$0xff] %v216
        %v219 = vld.sshfl [vmem:[#allocation1] sm:$0xff pattern:$0x75316420]
        %v220 = vld.sshfl [vmem:[#allocation1 + $0x8] sm:$0xff pattern:$0x75316420]
        %vm223 = vcmask 1043456
        %v224 = vsel %vm223, %v219, -inf
        %v225 = vrot.slane %v224, 4
        %v226 = vmax.f32 %v224, %v225
        %v227 = vrot.slane %v226, 2
        %v228 = vmax.f32 %v226, %v227
        %v229 = vrot.slane %v228, 1
        %v230 = vmax.f32 %v228, %v229
        %v231 = vsel %vm223, %v220, -inf
        %v232 = vrot.slane %v231, 4
        %v233 = vmax.f32 %v231, %v232
        %v234 = vrot.slane %v233, 2
        %v235 = vmax.f32 %v233, %v234
        %v236 = vrot.slane %v235, 1
        %v237 = vmax.f32 %v235, %v236
        %238 = vst [vmem:[#allocation1] ss:$2 sm:$0xff] %v216
        %v239 = vld.sshfl [vmem:[#allocation1] sm:$0xff pattern:$0x75316420]
        %v240 = vld.sshfl [vmem:[#allocation1 + $0x8] sm:$0xff pattern:$0x75316420]
        %v243 = vsel %vm223, %v239, 0.0
        %v244 = vrot.slane %v243, 4
        %v245 = vadd.f32 %v243, %v244
        %v246 = vrot.slane %v245, 2
        %v247 = vadd.f32 %v245, %v246
        %v248 = vrot.slane %v247, 1
        %v249 = vadd.f32 %v247, %v248
        %v250 = vsel %vm223, %v240, 0.0
        %v251 = vrot.slane %v250, 4
        %v252 = vadd.f32 %v250, %v251
        %v253 = vrot.slane %v252, 2
        %v254 = vadd.f32 %v252, %v253
        %v255 = vrot.slane %v254, 1
        %v256 = vadd.f32 %v254, %v255
        %v257 = vmul.f32 %v249, 0.25
        %v258 = vmul.f32 %v256, 0.25
        %260 = vrot.lane.b32.xlu0 %v230, 112
        %v261 = vpop.permute.xlu0 %260
        %263 = vrot.lane.b32.xlu0 %v230, 96
        %v264 = vpop.permute.xlu0 %263
        %266 = vrot.lane.b32.xlu0 %v230, 80
        %v267 = vpop.permute.xlu0 %266
        %269 = vrot.lane.b32.xlu0 %v230, 64
        %v270 = vpop.permute.xlu0 %269
        %272 = vrot.lane.b32.xlu0 %v230, 48
        %v273 = vpop.permute.xlu0 %272
        %275 = vrot.lane.b32.xlu0 %v230, 32
        %v276 = vpop.permute.xlu0 %275
        %278 = vrot.lane.b32.xlu0 %v230, 16
        %v279 = vpop.permute.xlu0 %278
        %282 = vrot.lane.b32.xlu0 %v237, 112
        %v283 = vpop.permute.xlu0 %282
        %285 = vrot.lane.b32.xlu0 %v237, 96
        %v286 = vpop.permute.xlu0 %285
        %288 = vrot.lane.b32.xlu0 %v237, 80
        %v289 = vpop.permute.xlu0 %288
        %291 = vrot.lane.b32.xlu0 %v237, 64
        %v292 = vpop.permute.xlu0 %291
        %294 = vrot.lane.b32.xlu0 %v237, 48
        %v295 = vpop.permute.xlu0 %294
        %297 = vrot.lane.b32.xlu0 %v237, 32
        %v298 = vpop.permute.xlu0 %297
        %300 = vrot.lane.b32.xlu0 %v237, 16
        %v301 = vpop.permute.xlu0 %300
        %vm303 = vcmask 1040384
        %v304 = vsel %vm303, %v230, %v261
        %vm305 = vcmask 1041408
        %v306 = vsel %vm305, %v304, %v264
        %vm307 = vcmask 1042432
        %v308 = vsel %vm307, %v306, %v267
        %v309 = vsel %vm223, %v308, %v270
        %vm310 = vcmask 1044480
        %v311 = vsel %vm310, %v309, %v273
        %vm312 = vcmask 1045504
        %v313 = vsel %vm312, %v311, %v276
        %vm314 = vcmask 1046528
        %v315 = vsel %vm314, %v313, %v279
        %v316 = vsel %vm303, %v237, %v283
        %v317 = vsel %vm305, %v316, %v286
        %v318 = vsel %vm307, %v317, %v289
        %v319 = vsel %vm223, %v318, %v292
        %v320 = vsel %vm310, %v319, %v295
        %v321 = vsel %vm312, %v320, %v298
        %v322 = vsel %vm314, %v321, %v301
        %325 = vrot.lane.b32.xlu0 %v315, 3
        %v326 = vpop.permute.xlu0 %325
        %327 = vrot.lane.b32.xlu0 %v322, 3
        %v328 = vpop.permute.xlu0 %327
        %vm331 = vcmask 23552
        %v332 = vsel %vm331, 0.0, %v326
        %v333 = vsel %vm331, 0.0, %v328
        %vm334 = vcmask 154624
        %v335 = vsel %vm334, %v332, 0.0
        %v336 = vsel %vm334, %v333, 0.0
        %338 = vrot.lane.b32.xlu0 %v257, 112
        %v339 = vpop.permute.xlu0 %338
        %341 = vrot.lane.b32.xlu0 %v257, 96
        %v342 = vpop.permute.xlu0 %341
        %344 = vrot.lane.b32.xlu0 %v257, 80
        %v345 = vpop.permute.xlu0 %344
        %347 = vrot.lane.b32.xlu0 %v257, 64
        %v348 = vpop.permute.xlu0 %347
        %350 = vrot.lane.b32.xlu0 %v257, 48
        %v351 = vpop.permute.xlu0 %350
        %353 = vrot.lane.b32.xlu0 %v257, 32
        %v354 = vpop.permute.xlu0 %353
        %356 = vrot.lane.b32.xlu0 %v257, 16
        %v357 = vpop.permute.xlu0 %356
        %360 = vrot.lane.b32.xlu0 %v258, 112
        %v361 = vpop.permute.xlu0 %360
        %363 = vrot.lane.b32.xlu0 %v258, 96
        %v364 = vpop.permute.xlu0 %363
        %366 = vrot.lane.b32.xlu0 %v258, 80
        %v367 = vpop.permute.xlu0 %366
        %369 = vrot.lane.b32.xlu0 %v258, 64
        %v370 = vpop.permute.xlu0 %369
        %372 = vrot.lane.b32.xlu0 %v258, 48
        %v373 = vpop.permute.xlu0 %372
        %375 = vrot.lane.b32.xlu0 %v258, 32
        %v376 = vpop.permute.xlu0 %375
        %378 = vrot.lane.b32.xlu0 %v258, 16
        %v379 = vpop.permute.xlu0 %378
        %v381 = vsel %vm303, %v257, %v339
        %v382 = vsel %vm305, %v381, %v342
        %v383 = vsel %vm307, %v382, %v345
        %v384 = vsel %vm223, %v383, %v348
        %v385 = vsel %vm310, %v384, %v351
        %v386 = vsel %vm312, %v385, %v354
        %v387 = vsel %vm314, %v386, %v357
        %v388 = vsel %vm303, %v258, %v361
        %v389 = vsel %vm305, %v388, %v364
        %v390 = vsel %vm307, %v389, %v367
        %v391 = vsel %vm223, %v390, %v370
        %v392 = vsel %vm310, %v391, %v373
        %v393 = vsel %vm312, %v392, %v376
        %v394 = vsel %vm314, %v393, %v379
        %397 = vrot.lane.b32.xlu0 %v387, 3
        %v398 = vpop.permute.xlu0 %397
        %399 = vrot.lane.b32.xlu0 %v394, 3
        %v400 = vpop.permute.xlu0 %399
        %v403 = vsel %vm331, 0.0, %v398
        %v404 = vsel %vm331, 0.0, %v400
        %v405 = vsel %vm334, %v403, 0.0
        %v406 = vsel %vm334, %v404, 0.0
        %409 = vrot.lane.b32.xlu0 %v405, 22
        %v410 = vpop.permute.xlu0 %409
        %411 = vrot.lane.b32.xlu0 %v406, 22
        %v412 = vpop.permute.xlu0 %411
        %vm415 = vcmask 179200
        %v416 = vsel %vm415, %v335, %v410
        %v417 = vsel %vm415, %v336, %v412
        %vm418 = vcmask 359424
        %v419 = vsel %vm418, %v416, 0.0
        %v420 = vsel %vm418, %v417, 0.0
        %v423 = vrot.slane %v419, 5
        %v424 = vrot.slane %v420, 5
        %v425 = vsel %vm307, %v423, %v424
        %v429 = vsel %vm307, 0.0, %v423
        %v430 = vsel %vm307, %v424, 0.0
        %v431 = vlaneseq
        %v432 = vand.u32 %v431, 127
        %vm433 = vcmp.lt.s32.totalorder %v432, 22
        %v434 = vsel %vm433, 1, 0
        %v435 = vcvt.s32.f32 %v434
        %v436 = vsub.f32 1.0, %v435
        %s437 = sld [smem:[#allocation2]]
        %s438 = sld [smem:[#allocation2 + $0x31]]
        %v439 = vstv %s437
        %v440 = vmul.f32 %v439, %v435
        %v441 = vstv %s438
        %v442 = vmul.f32 %v441, %v436
        %v443 = vadd.f32 %v440, %v442
        %v444 = vmul.f32 %v443, %v429
        %v445 = vmul.f32 %v443, %v425
        %v446 = vadd.f32 %v444, 0.0
        %v447 = vadd.f32 %v445, 0.0
        %s448 = sld [smem:[#allocation2 + $0x1]]
        %s449 = sld [smem:[#allocation2 + $0x32]]
        %v450 = vstv %s448
        %v451 = vmul.f32 %v450, %v435
        %v452 = vstv %s449
        %v453 = vmul.f32 %v452, %v436
        %v454 = vadd.f32 %v451, %v453
        %456 = vrot.lane.b32.xlu0 %v429, 127
        %v457 = vpop.permute.xlu0 %456
        %458 = vrot.lane.b32.xlu0 %v425, 127
        %v459 = vpop.permute.xlu0 %458
        %v462 = vmul.f32 %v454, %v457
        %v463 = vmul.f32 %v454, %v459
        %v464 = vadd.f32 %v446, %v462
        %v465 = vadd.f32 %v447, %v463
        %s466 = sld [smem:[#allocation2 + $0x2]]
        %s467 = sld [smem:[#allocation2 + $0x33]]
        %v468 = vstv %s466
        %v469 = vmul.f32 %v468, %v435
        %v470 = vstv %s467
        %v471 = vmul.f32 %v470, %v436
        %v472 = vadd.f32 %v469, %v471
        %473 = vrot.lane.b32.xlu0 %v429, 126
        %v474 = vpop.permute.xlu0 %473
        %475 = vrot.lane.b32.xlu0 %v425, 126
        %v476 = vpop.permute.xlu0 %475
        %v479 = vmul.f32 %v472, %v474
        %v480 = vmul.f32 %v472, %v476
        %v481 = vadd.f32 %v464, %v479
        %v482 = vadd.f32 %v465, %v480
        %s483 = sld [smem:[#allocation2 + $0x3]]
        %s484 = sld [smem:[#allocation2 + $0x34]]
        %v485 = vstv %s483
        %v486 = vmul.f32 %v485, %v435
        %v487 = vstv %s484
        %v488 = vmul.f32 %v487, %v436
        %v489 = vadd.f32 %v486, %v488
        %490 = vrot.lane.b32.xlu0 %v429, 125
        %v491 = vpop.permute.xlu0 %490
        %492 = vrot.lane.b32.xlu0 %v425, 125
        %v493 = vpop.permute.xlu0 %492
        %v496 = vmul.f32 %v489, %v491
        %v497 = vmul.f32 %v489, %v493
        %v498 = vadd.f32 %v481, %v496
        %v499 = vadd.f32 %v482, %v497
        %s500 = sld [smem:[#allocation2 + $0x4]]
        %s501 = sld [smem:[#allocation2 + $0x35]]
        %v502 = vstv %s500
        %v503 = vmul.f32 %v502, %v435
        %v504 = vstv %s501
        %v505 = vmul.f32 %v504, %v436
        %v506 = vadd.f32 %v503, %v505
        %507 = vrot.lane.b32.xlu0 %v429, 124
        %v508 = vpop.permute.xlu0 %507
        %509 = vrot.lane.b32.xlu0 %v425, 124
        %v510 = vpop.permute.xlu0 %509
        %v513 = vmul.f32 %v506, %v508
        %v514 = vmul.f32 %v506, %v510
        %v515 = vadd.f32 %v498, %v513
        %v516 = vadd.f32 %v499, %v514
        %s517 = sld [smem:[#allocation2 + $0x5]]
        %s518 = sld [smem:[#allocation2 + $0x36]]
        %v519 = vstv %s517
        %v520 = vmul.f32 %v519, %v435
        %v521 = vstv %s518
        %v522 = vmul.f32 %v521, %v436
        %v523 = vadd.f32 %v520, %v522
        %524 = vrot.lane.b32.xlu0 %v429, 123
        %v525 = vpop.permute.xlu0 %524
        %526 = vrot.lane.b32.xlu0 %v425, 123
        %v527 = vpop.permute.xlu0 %526
        %v530 = vmul.f32 %v523, %v525
        %v531 = vmul.f32 %v523, %v527
        %v532 = vadd.f32 %v515, %v530
        %v533 = vadd.f32 %v516, %v531
        %s534 = sld [smem:[#allocation2 + $0x6]]
        %s535 = sld [smem:[#allocation2 + $0x37]]
        %v536 = vstv %s534
        %v537 = vmul.f32 %v536, %v435
        %v538 = vstv %s535
        %v539 = vmul.f32 %v538, %v436
        %v540 = vadd.f32 %v537, %v539
        %541 = vrot.lane.b32.xlu0 %v429, 122
        %v542 = vpop.permute.xlu0 %541
        %543 = vrot.lane.b32.xlu0 %v425, 122
        %v544 = vpop.permute.xlu0 %543
        %v547 = vmul.f32 %v540, %v542
        %v548 = vmul.f32 %v540, %v544
        %v549 = vadd.f32 %v532, %v547
        %v550 = vadd.f32 %v533, %v548
        %s551 = sld [smem:[#allocation2 + $0x7]]
        %s552 = sld [smem:[#allocation2 + $0x38]]
        %v553 = vstv %s551
        %v554 = vmul.f32 %v553, %v435
        %v555 = vstv %s552
        %v556 = vmul.f32 %v555, %v436
        %v557 = vadd.f32 %v554, %v556
        %v558 = vmul.f32 %v557, %v429
        %v559 = vmul.f32 %v557, %v425
        %v560 = vmul.f32 %v557, %v430
        %v564 = vrot.slane %v558, 1
        %v565 = vrot.slane %v559, 1
        %v566 = vsel %vm314, %v564, %v565
        %v567 = vrot.slane %v560, 1
        %v568 = vsel %vm314, %v565, %v567
        %v571 = vadd.f32 %v549, %v566
        %v572 = vadd.f32 %v550, %v568
        %s573 = sld [smem:[#allocation2 + $0x8]]
        %s574 = sld [smem:[#allocation2 + $0x39]]
        %v575 = vstv %s573
        %v576 = vmul.f32 %v575, %v435
        %v577 = vstv %s574
        %v578 = vmul.f32 %v577, %v436
        %v579 = vadd.f32 %v576, %v578
        %v581 = vrot.slane %v429, 1
        %v582 = vrot.slane %v425, 1
        %v583 = vsel %vm314, %v581, %v582
        %v584 = vrot.slane %v430, 1
        %v585 = vsel %vm314, %v582, %v584
        %586 = vrot.lane.b32.xlu0 %v583, 127
        %v587 = vpop.permute.xlu0 %586
        %588 = vrot.lane.b32.xlu0 %v585, 127
        %v589 = vpop.permute.xlu0 %588
        %v592 = vmul.f32 %v579, %v587
        %v593 = vmul.f32 %v579, %v589
        %v594 = vadd.f32 %v571, %v592
        %v595 = vadd.f32 %v572, %v593
        %s596 = sld [smem:[#allocation2 + $0x9]]
        %s597 = sld [smem:[#allocation2 + $0x3a]]
        %v598 = vstv %s596
        %v599 = vmul.f32 %v598, %v435
        %v600 = vstv %s597
        %v601 = vmul.f32 %v600, %v436
        %v602 = vadd.f32 %v599, %v601
        %603 = vrot.lane.b32.xlu0 %v583, 126
        %v604 = vpop.permute.xlu0 %603
        %605 = vrot.lane.b32.xlu0 %v585, 126
        %v606 = vpop.permute.xlu0 %605
        %v609 = vmul.f32 %v602, %v604
        %v610 = vmul.f32 %v602, %v606
        %v611 = vadd.f32 %v594, %v609
        %v612 = vadd.f32 %v595, %v610
        %s613 = sld [smem:[#allocation2 + $0xa]]
        %s614 = sld [smem:[#allocation2 + $0x3b]]
        %v615 = vstv %s613
        %v616 = vmul.f32 %v615, %v435
        %v617 = vstv %s614
        %v618 = vmul.f32 %v617, %v436
        %v619 = vadd.f32 %v616, %v618
        %620 = vrot.lane.b32.xlu0 %v583, 125
        %v621 = vpop.permute.xlu0 %620
        %622 = vrot.lane.b32.xlu0 %v585, 125
        %v623 = vpop.permute.xlu0 %622
        %v626 = vmul.f32 %v619, %v621
        %v627 = vmul.f32 %v619, %v623
        %v628 = vadd.f32 %v611, %v626
        %v629 = vadd.f32 %v612, %v627
        %s630 = sld [smem:[#allocation2 + $0xb]]
        %s631 = sld [smem:[#allocation2 + $0x3c]]
        %v632 = vstv %s630
        %v633 = vmul.f32 %v632, %v435
        %v634 = vstv %s631
        %v635 = vmul.f32 %v634, %v436
        %v636 = vadd.f32 %v633, %v635
        %637 = vrot.lane.b32.xlu0 %v583, 124
        %v638 = vpop.permute.xlu0 %637
        %639 = vrot.lane.b32.xlu0 %v585, 124
        %v640 = vpop.permute.xlu0 %639
        %v643 = vmul.f32 %v636, %v638
        %v644 = vmul.f32 %v636, %v640
        %v645 = vadd.f32 %v628, %v643
        %v646 = vadd.f32 %v629, %v644
        %s647 = sld [smem:[#allocation2 + $0xc]]
        %s648 = sld [smem:[#allocation2 + $0x3d]]
        %v649 = vstv %s647
        %v650 = vmul.f32 %v649, %v435
        %v651 = vstv %s648
        %v652 = vmul.f32 %v651, %v436
        %v653 = vadd.f32 %v650, %v652
        %654 = vrot.lane.b32.xlu0 %v583, 123
        %v655 = vpop.permute.xlu0 %654
        %656 = vrot.lane.b32.xlu0 %v585, 123
        %v657 = vpop.permute.xlu0 %656
        %v660 = vmul.f32 %v653, %v655
        %v661 = vmul.f32 %v653, %v657
        %v662 = vadd.f32 %v645, %v660
        %v663 = vadd.f32 %v646, %v661
        %s664 = sld [smem:[#allocation2 + $0xd]]
        %s665 = sld [smem:[#allocation2 + $0x3e]]
        %v666 = vstv %s664
        %v667 = vmul.f32 %v666, %v435
        %v668 = vstv %s665
        %v669 = vmul.f32 %v668, %v436
        %v670 = vadd.f32 %v667, %v669
        %671 = vrot.lane.b32.xlu0 %v583, 122
        %v672 = vpop.permute.xlu0 %671
        %673 = vrot.lane.b32.xlu0 %v585, 122
        %v674 = vpop.permute.xlu0 %673
        %v677 = vmul.f32 %v670, %v672
        %v678 = vmul.f32 %v670, %v674
        %v679 = vadd.f32 %v662, %v677
        %v680 = vadd.f32 %v663, %v678
        %s681 = sld [smem:[#allocation2 + $0xe]]
        %s682 = sld [smem:[#allocation2 + $0x3f]]
        %v683 = vstv %s681
        %v684 = vmul.f32 %v683, %v435
        %v685 = vstv %s682
        %v686 = vmul.f32 %v685, %v436
        %v687 = vadd.f32 %v684, %v686
        %v688 = vmul.f32 %v687, %v429
        %v689 = vmul.f32 %v687, %v425
        %v690 = vmul.f32 %v687, %v430
        %v694 = vrot.slane %v688, 2
        %v695 = vrot.slane %v689, 2
        %v696 = vsel %vm312, %v694, %v695
        %v697 = vrot.slane %v690, 2
        %v698 = vsel %vm312, %v695, %v697
        %v701 = vadd.f32 %v679, %v696
        %v702 = vadd.f32 %v680, %v698
        %s703 = sld [smem:[#allocation2 + $0xf]]
        %s704 = sld [smem:[#allocation2 + $0x40]]
        %v705 = vstv %s703
        %v706 = vmul.f32 %v705, %v435
        %v707 = vstv %s704
        %v708 = vmul.f32 %v707, %v436
        %v709 = vadd.f32 %v706, %v708
        %v710 = vrot.slane %v429, 2
        %v711 = vrot.slane %v425, 2
        %v712 = vsel %vm312, %v710, %v711
        %v713 = vrot.slane %v430, 2
        %v714 = vsel %vm312, %v711, %v713
        %715 = vrot.lane.b32.xlu0 %v712, 127
        %v716 = vpop.permute.xlu0 %715
        %717 = vrot.lane.b32.xlu0 %v714, 127
        %v718 = vpop.permute.xlu0 %717
        %v721 = vmul.f32 %v709, %v716
        %v722 = vmul.f32 %v709, %v718
        %v723 = vadd.f32 %v701, %v721
        %v724 = vadd.f32 %v702, %v722
        %s725 = sld [smem:[#allocation2 + $0x10]]
        %s726 = sld [smem:[#allocation2 + $0x41]]
        %v727 = vstv %s725
        %v728 = vmul.f32 %v727, %v435
        %v729 = vstv %s726
        %v730 = vmul.f32 %v729, %v436
        %v731 = vadd.f32 %v728, %v730
        %732 = vrot.lane.b32.xlu0 %v712, 126
        %v733 = vpop.permute.xlu0 %732
        %734 = vrot.lane.b32.xlu0 %v714, 126
        %v735 = vpop.permute.xlu0 %734
        %v738 = vmul.f32 %v731, %v733
        %v739 = vmul.f32 %v731, %v735
        %v740 = vadd.f32 %v723, %v738
        %v741 = vadd.f32 %v724, %v739
        %s742 = sld [smem:[#allocation2 + $0x11]]
        %s743 = sld [smem:[#allocation2 + $0x42]]
        %v744 = vstv %s742
        %v745 = vmul.f32 %v744, %v435
        %v746 = vstv %s743
        %v747 = vmul.f32 %v746, %v436
        %v748 = vadd.f32 %v745, %v747
        %749 = vrot.lane.b32.xlu0 %v712, 125
        %v750 = vpop.permute.xlu0 %749
        %751 = vrot.lane.b32.xlu0 %v714, 125
        %v752 = vpop.permute.xlu0 %751
        %v755 = vmul.f32 %v748, %v750
        %v756 = vmul.f32 %v748, %v752
        %v757 = vadd.f32 %v740, %v755
        %v758 = vadd.f32 %v741, %v756
        %s759 = sld [smem:[#allocation2 + $0x12]]
        %s760 = sld [smem:[#allocation2 + $0x43]]
        %v761 = vstv %s759
        %v762 = vmul.f32 %v761, %v435
        %v763 = vstv %s760
        %v764 = vmul.f32 %v763, %v436
        %v765 = vadd.f32 %v762, %v764
        %766 = vrot.lane.b32.xlu0 %v712, 124
        %v767 = vpop.permute.xlu0 %766
        %768 = vrot.lane.b32.xlu0 %v714, 124
        %v769 = vpop.permute.xlu0 %768
        %v772 = vmul.f32 %v765, %v767
        %v773 = vmul.f32 %v765, %v769
        %v774 = vadd.f32 %v757, %v772
        %v775 = vadd.f32 %v758, %v773
        %s776 = sld [smem:[#allocation2 + $0x13]]
        %s777 = sld [smem:[#allocation2 + $0x44]]
        %v778 = vstv %s776
        %v779 = vmul.f32 %v778, %v435
        %v780 = vstv %s777
        %v781 = vmul.f32 %v780, %v436
        %v782 = vadd.f32 %v779, %v781
        %783 = vrot.lane.b32.xlu0 %v712, 123
        %v784 = vpop.permute.xlu0 %783
        %785 = vrot.lane.b32.xlu0 %v714, 123
        %v786 = vpop.permute.xlu0 %785
        %v789 = vmul.f32 %v782, %v784
        %v790 = vmul.f32 %v782, %v786
        %v791 = vadd.f32 %v774, %v789
        %v792 = vadd.f32 %v775, %v790
        %s793 = sld [smem:[#allocation2 + $0x14]]
        %s794 = sld [smem:[#allocation2 + $0x45]]
        %v795 = vstv %s793
        %v796 = vmul.f32 %v795, %v435
        %v797 = vstv %s794
        %v798 = vmul.f32 %v797, %v436
        %v799 = vadd.f32 %v796, %v798
        %800 = vrot.lane.b32.xlu0 %v712, 122
        %v801 = vpop.permute.xlu0 %800
        %802 = vrot.lane.b32.xlu0 %v714, 122
        %v803 = vpop.permute.xlu0 %802
        %v806 = vmul.f32 %v799, %v801
        %v807 = vmul.f32 %v799, %v803
        %v808 = vadd.f32 %v791, %v806
        %v809 = vadd.f32 %v792, %v807
        %s810 = sld [smem:[#allocation2 + $0x15]]
        %s811 = sld [smem:[#allocation2 + $0x46]]
        %v812 = vstv %s810
        %v813 = vmul.f32 %v812, %v435
        %v814 = vstv %s811
        %v815 = vmul.f32 %v814, %v436
        %v816 = vadd.f32 %v813, %v815
        %v817 = vmul.f32 %v816, %v429
        %v818 = vmul.f32 %v816, %v425
        %v819 = vmul.f32 %v816, %v430
        %v823 = vrot.slane %v817, 3
        %v824 = vrot.slane %v818, 3
        %v825 = vsel %vm310, %v823, %v824
        %v826 = vrot.slane %v819, 3
        %v827 = vsel %vm310, %v824, %v826
        %v830 = vadd.f32 %v808, %v825
        %v831 = vadd.f32 %v809, %v827
        %s832 = sld [smem:[#allocation2 + $0x16]]
        %s833 = sld [smem:[#allocation2 + $0x47]]
        %v834 = vstv %s832
        %v835 = vmul.f32 %v834, %v435
        %v836 = vstv %s833
        %v837 = vmul.f32 %v836, %v436
        %v838 = vadd.f32 %v835, %v837
        %v839 = vrot.slane %v429, 3
        %v840 = vrot.slane %v425, 3
        %v841 = vsel %vm310, %v839, %v840
        %v842 = vrot.slane %v430, 3
        %v843 = vsel %vm310, %v840, %v842
        %844 = vrot.lane.b32.xlu0 %v841, 127
        %v845 = vpop.permute.xlu0 %844
        %846 = vrot.lane.b32.xlu0 %v843, 127
        %v847 = vpop.permute.xlu0 %846
        %v850 = vmul.f32 %v838, %v845
        %v851 = vmul.f32 %v838, %v847
        %v852 = vadd.f32 %v830, %v850
        %v853 = vadd.f32 %v831, %v851
        %s854 = sld [smem:[#allocation2 + $0x17]]
        %s855 = sld [smem:[#allocation2 + $0x48]]
        %v856 = vstv %s854
        %v857 = vmul.f32 %v856, %v435
        %v858 = vstv %s855
        %v859 = vmul.f32 %v858, %v436
        %v860 = vadd.f32 %v857, %v859
        %861 = vrot.lane.b32.xlu0 %v841, 126
        %v862 = vpop.permute.xlu0 %861
        %863 = vrot.lane.b32.xlu0 %v843, 126
        %v864 = vpop.permute.xlu0 %863
        %v867 = vmul.f32 %v860, %v862
        %v868 = vmul.f32 %v860, %v864
        %v869 = vadd.f32 %v852, %v867
        %v870 = vadd.f32 %v853, %v868
        %s871 = sld [smem:[#allocation2 + $0x18]]
        %s872 = sld [smem:[#allocation2 + $0x49]]
        %v873 = vstv %s871
        %v874 = vmul.f32 %v873, %v435
        %v875 = vstv %s872
        %v876 = vmul.f32 %v875, %v436
        %v877 = vadd.f32 %v874, %v876
        %878 = vrot.lane.b32.xlu0 %v841, 125
        %v879 = vpop.permute.xlu0 %878
        %880 = vrot.lane.b32.xlu0 %v843, 125
        %v881 = vpop.permute.xlu0 %880
        %v884 = vmul.f32 %v877, %v879
        %v885 = vmul.f32 %v877, %v881
        %v886 = vadd.f32 %v869, %v884
        %v887 = vadd.f32 %v870, %v885
        %s888 = sld [smem:[#allocation2 + $0x19]]
        %s889 = sld [smem:[#allocation2 + $0x4a]]
        %v890 = vstv %s888
        %v891 = vmul.f32 %v890, %v435
        %v892 = vstv %s889
        %v893 = vmul.f32 %v892, %v436
        %v894 = vadd.f32 %v891, %v893
        %895 = vrot.lane.b32.xlu0 %v841, 124
        %v896 = vpop.permute.xlu0 %895
        %897 = vrot.lane.b32.xlu0 %v843, 124
        %v898 = vpop.permute.xlu0 %897
        %v901 = vmul.f32 %v894, %v896
        %v902 = vmul.f32 %v894, %v898
        %v903 = vadd.f32 %v886, %v901
        %v904 = vadd.f32 %v887, %v902
        %s905 = sld [smem:[#allocation2 + $0x1a]]
        %s906 = sld [smem:[#allocation2 + $0x4b]]
        %v907 = vstv %s905
        %v908 = vmul.f32 %v907, %v435
        %v909 = vstv %s906
        %v910 = vmul.f32 %v909, %v436
        %v911 = vadd.f32 %v908, %v910
        %912 = vrot.lane.b32.xlu0 %v841, 123
        %v913 = vpop.permute.xlu0 %912
        %914 = vrot.lane.b32.xlu0 %v843, 123
        %v915 = vpop.permute.xlu0 %914
        %v918 = vmul.f32 %v911, %v913
        %v919 = vmul.f32 %v911, %v915
        %v920 = vadd.f32 %v903, %v918
        %v921 = vadd.f32 %v904, %v919
        %s922 = sld [smem:[#allocation2 + $0x1b]]
        %s923 = sld [smem:[#allocation2 + $0x4c]]
        %v924 = vstv %s922
        %v925 = vmul.f32 %v924, %v435
        %v926 = vstv %s923
        %v927 = vmul.f32 %v926, %v436
        %v928 = vadd.f32 %v925, %v927
        %929 = vrot.lane.b32.xlu0 %v841, 122
        %v930 = vpop.permute.xlu0 %929
        %931 = vrot.lane.b32.xlu0 %v843, 122
        %v932 = vpop.permute.xlu0 %931
        %v935 = vmul.f32 %v928, %v930
        %v936 = vmul.f32 %v928, %v932
        %v937 = vadd.f32 %v920, %v935
        %v938 = vadd.f32 %v921, %v936
        %s939 = sld [smem:[#allocation2 + $0x1c]]
        %s940 = sld [smem:[#allocation2 + $0x4d]]
        %v941 = vstv %s939
        %v942 = vmul.f32 %v941, %v435
        %v943 = vstv %s940
        %v944 = vmul.f32 %v943, %v436
        %v945 = vadd.f32 %v942, %v944
        %v946 = vmul.f32 %v945, %v429
        %v947 = vmul.f32 %v945, %v425
        %v948 = vmul.f32 %v945, %v430
        %v952 = vrot.slane %v946, 4
        %v953 = vrot.slane %v947, 4
        %v954 = vsel %vm223, %v952, %v953
        %v955 = vrot.slane %v948, 4
        %v956 = vsel %vm223, %v953, %v955
        %v959 = vadd.f32 %v937, %v954
        %v960 = vadd.f32 %v938, %v956
        %s961 = sld [smem:[#allocation2 + $0x1d]]
        %s962 = sld [smem:[#allocation2 + $0x4e]]
        %v963 = vstv %s961
        %v964 = vmul.f32 %v963, %v435
        %v965 = vstv %s962
        %v966 = vmul.f32 %v965, %v436
        %v967 = vadd.f32 %v964, %v966
        %v968 = vrot.slane %v429, 4
        %v969 = vrot.slane %v425, 4
        %v970 = vsel %vm223, %v968, %v969
        %v971 = vrot.slane %v430, 4
        %v972 = vsel %vm223, %v969, %v971
        %973 = vrot.lane.b32.xlu0 %v970, 127
        %v974 = vpop.permute.xlu0 %973
        %975 = vrot.lane.b32.xlu0 %v972, 127
        %v976 = vpop.permute.xlu0 %975
        %v979 = vmul.f32 %v967, %v974
        %v980 = vmul.f32 %v967, %v976
        %v981 = vadd.f32 %v959, %v979
        %v982 = vadd.f32 %v960, %v980
        %s983 = sld [smem:[#allocation2 + $0x1e]]
        %s984 = sld [smem:[#allocation2 + $0x4f]]
        %v985 = vstv %s983
        %v986 = vmul.f32 %v985, %v435
        %v987 = vstv %s984
        %v988 = vmul.f32 %v987, %v436
        %v989 = vadd.f32 %v986, %v988
        %990 = vrot.lane.b32.xlu0 %v970, 126
        %v991 = vpop.permute.xlu0 %990
        %992 = vrot.lane.b32.xlu0 %v972, 126
        %v993 = vpop.permute.xlu0 %992
        %v996 = vmul.f32 %v989, %v991
        %v997 = vmul.f32 %v989, %v993
        %v998 = vadd.f32 %v981, %v996
        %v999 = vadd.f32 %v982, %v997
        %s1000 = sld [smem:[#allocation2 + $0x1f]]
        %s1001 = sld [smem:[#allocation2 + $0x50]]
        %v1002 = vstv %s1000
        %v1003 = vmul.f32 %v1002, %v435
        %v1004 = vstv %s1001
        %v1005 = vmul.f32 %v1004, %v436
        %v1006 = vadd.f32 %v1003, %v1005
        %1007 = vrot.lane.b32.xlu0 %v970, 125
        %v1008 = vpop.permute.xlu0 %1007
        %1009 = vrot.lane.b32.xlu0 %v972, 125
        %v1010 = vpop.permute.xlu0 %1009
        %v1013 = vmul.f32 %v1006, %v1008
        %v1014 = vmul.f32 %v1006, %v1010
        %v1015 = vadd.f32 %v998, %v1013
        %v1016 = vadd.f32 %v999, %v1014
        %s1017 = sld [smem:[#allocation2 + $0x20]]
        %s1018 = sld [smem:[#allocation2 + $0x51]]
        %v1019 = vstv %s1017
        %v1020 = vmul.f32 %v1019, %v435
        %v1021 = vstv %s1018
        %v1022 = vmul.f32 %v1021, %v436
        %v1023 = vadd.f32 %v1020, %v1022
        %1024 = vrot.lane.b32.xlu0 %v970, 124
        %v1025 = vpop.permute.xlu0 %1024
        %1026 = vrot.lane.b32.xlu0 %v972, 124
        %v1027 = vpop.permute.xlu0 %1026
        %v1030 = vmul.f32 %v1023, %v1025
        %v1031 = vmul.f32 %v1023, %v1027
        %v1032 = vadd.f32 %v1015, %v1030
        %v1033 = vadd.f32 %v1016, %v1031
        %s1034 = sld [smem:[#allocation2 + $0x21]]
        %s1035 = sld [smem:[#allocation2 + $0x52]]
        %v1036 = vstv %s1034
        %v1037 = vmul.f32 %v1036, %v435
        %v1038 = vstv %s1035
        %v1039 = vmul.f32 %v1038, %v436
        %v1040 = vadd.f32 %v1037, %v1039
        %1041 = vrot.lane.b32.xlu0 %v970, 123
        %v1042 = vpop.permute.xlu0 %1041
        %1043 = vrot.lane.b32.xlu0 %v972, 123
        %v1044 = vpop.permute.xlu0 %1043
        %v1047 = vmul.f32 %v1040, %v1042
        %v1048 = vmul.f32 %v1040, %v1044
        %v1049 = vadd.f32 %v1032, %v1047
        %v1050 = vadd.f32 %v1033, %v1048
        %s1051 = sld [smem:[#allocation2 + $0x22]]
        %s1052 = sld [smem:[#allocation2 + $0x53]]
        %v1053 = vstv %s1051
        %v1054 = vmul.f32 %v1053, %v435
        %v1055 = vstv %s1052
        %v1056 = vmul.f32 %v1055, %v436
        %v1057 = vadd.f32 %v1054, %v1056
        %1058 = vrot.lane.b32.xlu0 %v970, 122
        %v1059 = vpop.permute.xlu0 %1058
        %1060 = vrot.lane.b32.xlu0 %v972, 122
        %v1061 = vpop.permute.xlu0 %1060
        %v1064 = vmul.f32 %v1057, %v1059
        %v1065 = vmul.f32 %v1057, %v1061
        %v1066 = vadd.f32 %v1049, %v1064
        %v1067 = vadd.f32 %v1050, %v1065
        %s1068 = sld [smem:[#allocation2 + $0x23]]
        %s1069 = sld [smem:[#allocation2 + $0x54]]
        %v1070 = vstv %s1068
        %v1071 = vmul.f32 %v1070, %v435
        %v1072 = vstv %s1069
        %v1073 = vmul.f32 %v1072, %v436
        %v1074 = vadd.f32 %v1071, %v1073
        %v1075 = vmul.f32 %v1074, %v429
        %v1076 = vmul.f32 %v1074, %v425
        %v1077 = vmul.f32 %v1074, %v430
        %v1081 = vrot.slane %v1075, 5
        %v1082 = vrot.slane %v1076, 5
        %v1083 = vsel %vm307, %v1081, %v1082
        %v1084 = vrot.slane %v1077, 5
        %v1085 = vsel %vm307, %v1082, %v1084
        %v1088 = vadd.f32 %v1066, %v1083
        %v1089 = vadd.f32 %v1067, %v1085
        %s1090 = sld [smem:[#allocation2 + $0x24]]
        %s1091 = sld [smem:[#allocation2 + $0x55]]
        %v1092 = vstv %s1090
        %v1093 = vmul.f32 %v1092, %v435
        %v1094 = vstv %s1091
        %v1095 = vmul.f32 %v1094, %v436
        %v1096 = vadd.f32 %v1093, %v1095
        %v1097 = vrot.slane %v429, 5
        %v1098 = vrot.slane %v425, 5
        %v1099 = vsel %vm307, %v1097, %v1098
        %v1100 = vrot.slane %v430, 5
        %v1101 = vsel %vm307, %v1098, %v1100
        %1102 = vrot.lane.b32.xlu0 %v1099, 127
        %v1103 = vpop.permute.xlu0 %1102
        %1104 = vrot.lane.b32.xlu0 %v1101, 127
        %v1105 = vpop.permute.xlu0 %1104
        %v1108 = vmul.f32 %v1096, %v1103
        %v1109 = vmul.f32 %v1096, %v1105
        %v1110 = vadd.f32 %v1088, %v1108
        %v1111 = vadd.f32 %v1089, %v1109
        %s1112 = sld [smem:[#allocation2 + $0x25]]
        %s1113 = sld [smem:[#allocation2 + $0x56]]
        %v1114 = vstv %s1112
        %v1115 = vmul.f32 %v1114, %v435
        %v1116 = vstv %s1113
        %v1117 = vmul.f32 %v1116, %v436
        %v1118 = vadd.f32 %v1115, %v1117
        %1119 = vrot.lane.b32.xlu0 %v1099, 126
        %v1120 = vpop.permute.xlu0 %1119
        %1121 = vrot.lane.b32.xlu0 %v1101, 126
        %v1122 = vpop.permute.xlu0 %1121
        %v1125 = vmul.f32 %v1118, %v1120
        %v1126 = vmul.f32 %v1118, %v1122
        %v1127 = vadd.f32 %v1110, %v1125
        %v1128 = vadd.f32 %v1111, %v1126
        %s1129 = sld [smem:[#allocation2 + $0x26]]
        %s1130 = sld [smem:[#allocation2 + $0x57]]
        %v1131 = vstv %s1129
        %v1132 = vmul.f32 %v1131, %v435
        %v1133 = vstv %s1130
        %v1134 = vmul.f32 %v1133, %v436
        %v1135 = vadd.f32 %v1132, %v1134
        %1136 = vrot.lane.b32.xlu0 %v1099, 125
        %v1137 = vpop.permute.xlu0 %1136
        %1138 = vrot.lane.b32.xlu0 %v1101, 125
        %v1139 = vpop.permute.xlu0 %1138
        %v1142 = vmul.f32 %v1135, %v1137
        %v1143 = vmul.f32 %v1135, %v1139
        %v1144 = vadd.f32 %v1127, %v1142
        %v1145 = vadd.f32 %v1128, %v1143
        %s1146 = sld [smem:[#allocation2 + $0x27]]
        %s1147 = sld [smem:[#allocation2 + $0x58]]
        %v1148 = vstv %s1146
        %v1149 = vmul.f32 %v1148, %v435
        %v1150 = vstv %s1147
        %v1151 = vmul.f32 %v1150, %v436
        %v1152 = vadd.f32 %v1149, %v1151
        %1153 = vrot.lane.b32.xlu0 %v1099, 124
        %v1154 = vpop.permute.xlu0 %1153
        %1155 = vrot.lane.b32.xlu0 %v1101, 124
        %v1156 = vpop.permute.xlu0 %1155
        %v1159 = vmul.f32 %v1152, %v1154
        %v1160 = vmul.f32 %v1152, %v1156
        %v1161 = vadd.f32 %v1144, %v1159
        %v1162 = vadd.f32 %v1145, %v1160
        %s1163 = sld [smem:[#allocation2 + $0x28]]
        %s1164 = sld [smem:[#allocation2 + $0x59]]
        %v1165 = vstv %s1163
        %v1166 = vmul.f32 %v1165, %v435
        %v1167 = vstv %s1164
        %v1168 = vmul.f32 %v1167, %v436
        %v1169 = vadd.f32 %v1166, %v1168
        %1170 = vrot.lane.b32.xlu0 %v1099, 123
        %v1171 = vpop.permute.xlu0 %1170
        %1172 = vrot.lane.b32.xlu0 %v1101, 123
        %v1173 = vpop.permute.xlu0 %1172
        %v1176 = vmul.f32 %v1169, %v1171
        %v1177 = vmul.f32 %v1169, %v1173
        %v1178 = vadd.f32 %v1161, %v1176
        %v1179 = vadd.f32 %v1162, %v1177
        %s1180 = sld [smem:[#allocation2 + $0x29]]
        %s1181 = sld [smem:[#allocation2 + $0x5a]]
        %v1182 = vstv %s1180
        %v1183 = vmul.f32 %v1182, %v435
        %v1184 = vstv %s1181
        %v1185 = vmul.f32 %v1184, %v436
        %v1186 = vadd.f32 %v1183, %v1185
        %1187 = vrot.lane.b32.xlu0 %v1099, 122
        %v1188 = vpop.permute.xlu0 %1187
        %1189 = vrot.lane.b32.xlu0 %v1101, 122
        %v1190 = vpop.permute.xlu0 %1189
        %v1193 = vmul.f32 %v1186, %v1188
        %v1194 = vmul.f32 %v1186, %v1190
        %v1195 = vadd.f32 %v1178, %v1193
        %v1196 = vadd.f32 %v1179, %v1194
        %s1197 = sld [smem:[#allocation2 + $0x2a]]
        %s1198 = sld [smem:[#allocation2 + $0x5b]]
        %v1199 = vstv %s1197
        %v1200 = vmul.f32 %v1199, %v435
        %v1201 = vstv %s1198
        %v1202 = vmul.f32 %v1201, %v436
        %v1203 = vadd.f32 %v1200, %v1202
        %v1204 = vmul.f32 %v1203, %v429
        %v1205 = vmul.f32 %v1203, %v425
        %v1206 = vmul.f32 %v1203, %v430
        %v1210 = vrot.slane %v1204, 6
        %v1211 = vrot.slane %v1205, 6
        %v1212 = vsel %vm305, %v1210, %v1211
        %v1213 = vrot.slane %v1206, 6
        %v1214 = vsel %vm305, %v1211, %v1213
        %v1217 = vadd.f32 %v1195, %v1212
        %v1218 = vadd.f32 %v1196, %v1214
        %s1219 = sld [smem:[#allocation2 + $0x2b]]
        %s1220 = sld [smem:[#allocation2 + $0x5c]]
        %v1221 = vstv %s1219
        %v1222 = vmul.f32 %v1221, %v435
        %v1223 = vstv %s1220
        %v1224 = vmul.f32 %v1223, %v436
        %v1225 = vadd.f32 %v1222, %v1224
        %v1226 = vrot.slane %v429, 6
        %v1227 = vrot.slane %v425, 6
        %v1228 = vsel %vm305, %v1226, %v1227
        %v1229 = vrot.slane %v430, 6
        %v1230 = vsel %vm305, %v1227, %v1229
        %1231 = vrot.lane.b32.xlu0 %v1228, 127
        %v1232 = vpop.permute.xlu0 %1231
        %1233 = vrot.lane.b32.xlu0 %v1230, 127
        %v1234 = vpop.permute.xlu0 %1233
        %v1237 = vmul.f32 %v1225, %v1232
        %v1238 = vmul.f32 %v1225, %v1234
        %v1239 = vadd.f32 %v1217, %v1237
        %v1240 = vadd.f32 %v1218, %v1238
        %s1241 = sld [smem:[#allocation2 + $0x2c]]
        %s1242 = sld [smem:[#allocation2 + $0x5d]]
        %v1243 = vstv %s1241
        %v1244 = vmul.f32 %v1243, %v435
        %v1245 = vstv %s1242
        %v1246 = vmul.f32 %v1245, %v436
        %v1247 = vadd.f32 %v1244, %v1246
        %1248 = vrot.lane.b32.xlu0 %v1228, 126
        %v1249 = vpop.permute.xlu0 %1248
        %1250 = vrot.lane.b32.xlu0 %v1230, 126
        %v1251 = vpop.permute.xlu0 %1250
        %v1254 = vmul.f32 %v1247, %v1249
        %v1255 = vmul.f32 %v1247, %v1251
        %v1256 = vadd.f32 %v1239, %v1254
        %v1257 = vadd.f32 %v1240, %v1255
        %s1258 = sld [smem:[#allocation2 + $0x2d]]
        %s1259 = sld [smem:[#allocation2 + $0x5e]]
        %v1260 = vstv %s1258
        %v1261 = vmul.f32 %v1260, %v435
        %v1262 = vstv %s1259
        %v1263 = vmul.f32 %v1262, %v436
        %v1264 = vadd.f32 %v1261, %v1263
        %1265 = vrot.lane.b32.xlu0 %v1228, 125
        %v1266 = vpop.permute.xlu0 %1265
        %1267 = vrot.lane.b32.xlu0 %v1230, 125
        %v1268 = vpop.permute.xlu0 %1267
        %v1271 = vmul.f32 %v1264, %v1266
        %v1272 = vmul.f32 %v1264, %v1268
        %v1273 = vadd.f32 %v1256, %v1271
        %v1274 = vadd.f32 %v1257, %v1272
        %s1275 = sld [smem:[#allocation2 + $0x2e]]
        %s1276 = sld [smem:[#allocation2 + $0x5f]]
        %v1277 = vstv %s1275
        %v1278 = vmul.f32 %v1277, %v435
        %v1279 = vstv %s1276
        %v1280 = vmul.f32 %v1279, %v436
        %v1281 = vadd.f32 %v1278, %v1280
        %1282 = vrot.lane.b32.xlu0 %v1228, 124
        %v1283 = vpop.permute.xlu0 %1282
        %1284 = vrot.lane.b32.xlu0 %v1230, 124
        %v1285 = vpop.permute.xlu0 %1284
        %v1288 = vmul.f32 %v1281, %v1283
        %v1289 = vmul.f32 %v1281, %v1285
        %v1290 = vadd.f32 %v1273, %v1288
        %v1291 = vadd.f32 %v1274, %v1289
        %s1292 = sld [smem:[#allocation2 + $0x2f]]
        %s1293 = sld [smem:[#allocation2 + $0x60]]
        %v1294 = vstv %s1292
        %v1295 = vmul.f32 %v1294, %v435
        %v1296 = vstv %s1293
        %v1297 = vmul.f32 %v1296, %v436
        %v1298 = vadd.f32 %v1295, %v1297
        %1299 = vrot.lane.b32.xlu0 %v1228, 123
        %v1300 = vpop.permute.xlu0 %1299
        %1301 = vrot.lane.b32.xlu0 %v1230, 123
        %v1302 = vpop.permute.xlu0 %1301
        %v1305 = vmul.f32 %v1298, %v1300
        %v1306 = vmul.f32 %v1298, %v1302
        %v1307 = vadd.f32 %v1290, %v1305
        %v1308 = vadd.f32 %v1291, %v1306
        %s1309 = sld [smem:[#allocation2 + $0x30]]
        %s1310 = sld [smem:[#allocation2 + $0x61]]
        %v1311 = vstv %s1309
        %v1312 = vmul.f32 %v1311, %v435
        %v1313 = vstv %s1310
        %v1314 = vmul.f32 %v1313, %v436
        %v1315 = vadd.f32 %v1312, %v1314
        %1316 = vrot.lane.b32.xlu0 %v1228, 122
        %v1317 = vpop.permute.xlu0 %1316
        %1318 = vrot.lane.b32.xlu0 %v1230, 122
        %v1319 = vpop.permute.xlu0 %1318
        %v1322 = vmul.f32 %v1315, %v1317
        %v1323 = vmul.f32 %v1315, %v1319
        %v1324 = vadd.f32 %v1307, %v1322
        %v1325 = vadd.f32 %v1308, %v1323
        %s1326 = sld [smem:[#allocation6]]
        %s1327 = sld [smem:[#allocation6 + $0x1]]
        %1330 = vrot.lane.b32.xlu0 %v1324, 106
        %v1331 = vpop.permute.xlu0 %1330
        %1332 = vrot.lane.b32.xlu0 %v1325, 106
        %v1333 = vpop.permute.xlu0 %1332
        %v1336 = vadd.f32 %v1324, %v1331
        %v1337 = vadd.f32 %v1325, %v1333
        %v1338 = vstv %s1326
        %v1339 = vmul.f32 %v1336, %v1338
        %v1340 = vmul.f32 %v1337, %v1338
        %v1341 = vstv %s1327
        %v1342 = vadd.f32 %v1339, %v1341
        %v1343 = vadd.f32 %v1340, %v1341
        %v1344 = vxor.u32 %v1342, 2147483648
        %v1345 = vxor.u32 %v1343, 2147483648
        %v1346 = vmul.f32 %v1344, 1.442695
        %v1347 = vpow.pop %v1346
        %v1348 = vmul.f32 %v1345, 1.442695
        %v1349 = vpow.pop %v1348
        %v1350 = vadd.f32 %v1347, 1.0
        %v1351 = vadd.f32 %v1349, 1.0
        %v1352 = vrcp.pop %v1350
        %v1353 = vmul.f32 %v1350, %v1352
        %v1354 = vsub.f32 1.0, %v1353
        %v1355 = vmul.f32 %v1352, %v1354
        %v1356 = vadd.f32 %v1352, %v1355
        %vm1357 = vweird.f32 %v1350
        %vm1358 = vweird.f32 %v1352
        %vm1359 = vmor %vm1357, %vm1358
        %v1360 = vsel %vm1359, %v1352, %v1356
        %v1361 = vand.u32 2147483647, %v1350
        %vm1362 = vcmp.eq.f32.partialorder %v1361, 8.507059e+37
        %v1363 = vand.u32 %v1350, 2147483648
        %v1364 = vor.u32 1.1754944e-38, %v1363
        %v1365 = vsel %vm1362, %v1364, %v1360
        %v1366 = vmul.f32 1.0, %v1365
        %v1367 = vrcp.pop %v1351
        %v1368 = vmul.f32 %v1351, %v1367
        %v1369 = vsub.f32 1.0, %v1368
        %v1370 = vmul.f32 %v1367, %v1369
        %v1371 = vadd.f32 %v1367, %v1370
        %vm1372 = vweird.f32 %v1351
        %vm1373 = vweird.f32 %v1367
        %vm1374 = vmor %vm1372, %vm1373
        %v1375 = vsel %vm1374, %v1367, %v1371
        %v1376 = vand.u32 2147483647, %v1351
        %vm1377 = vcmp.eq.f32.partialorder %v1376, 8.507059e+37
        %v1378 = vand.u32 %v1351, 2147483648
        %v1379 = vor.u32 1.1754944e-38, %v1378
        %v1380 = vsel %vm1377, %v1379, %v1375
        %v1381 = vmul.f32 1.0, %v1380
        %v1383 = vrot.slane %v1366, 1
        %1384 = vrot.lane.b32.xlu0 %v1383, 16
        %v1385 = vpop.permute.xlu0 %1384
        %v1387 = vrot.slane %v1366, 2
        %1388 = vrot.lane.b32.xlu0 %v1387, 32
        %v1389 = vpop.permute.xlu0 %1388
        %v1391 = vrot.slane %v1366, 3
        %1392 = vrot.lane.b32.xlu0 %v1391, 48
        %v1393 = vpop.permute.xlu0 %1392
        %v1395 = vrot.slane %v1366, 4
        %1396 = vrot.lane.b32.xlu0 %v1395, 64
        %v1397 = vpop.permute.xlu0 %1396
        %v1399 = vrot.slane %v1366, 5
        %1400 = vrot.lane.b32.xlu0 %v1399, 80
        %v1401 = vpop.permute.xlu0 %1400
        %v1403 = vrot.slane %v1366, 6
        %1404 = vrot.lane.b32.xlu0 %v1403, 96
        %v1405 = vpop.permute.xlu0 %1404
        %v1407 = vrot.slane %v1366, 7
        %1408 = vrot.lane.b32.xlu0 %v1407, 112
        %v1409 = vpop.permute.xlu0 %1408
        %v1412 = vrot.slane %v1381, 1
        %1413 = vrot.lane.b32.xlu0 %v1412, 16
        %v1414 = vpop.permute.xlu0 %1413
        %v1416 = vrot.slane %v1381, 2
        %1417 = vrot.lane.b32.xlu0 %v1416, 32
        %v1418 = vpop.permute.xlu0 %1417
        %v1420 = vrot.slane %v1381, 3
        %1421 = vrot.lane.b32.xlu0 %v1420, 48
        %v1422 = vpop.permute.xlu0 %1421
        %v1424 = vrot.slane %v1381, 4
        %1425 = vrot.lane.b32.xlu0 %v1424, 64
        %v1426 = vpop.permute.xlu0 %1425
        %v1428 = vrot.slane %v1381, 5
        %1429 = vrot.lane.b32.xlu0 %v1428, 80
        %v1430 = vpop.permute.xlu0 %1429
        %v1432 = vrot.slane %v1381, 6
        %1433 = vrot.lane.b32.xlu0 %v1432, 96
        %v1434 = vpop.permute.xlu0 %1433
        %v1436 = vrot.slane %v1381, 7
        %1437 = vrot.lane.b32.xlu0 %v1436, 112
        %v1438 = vpop.permute.xlu0 %1437
        %vm1440 = vcmask 130048
        %v1441 = vsel %vm1440, %v1366, %v1385
        %vm1442 = vcmask 261120
        %v1443 = vsel %vm1442, %v1441, %v1389
        %vm1444 = vcmask 392192
        %v1445 = vsel %vm1444, %v1443, %v1393
        %vm1446 = vcmask 523264
        %v1447 = vsel %vm1446, %v1445, %v1397
        %vm1448 = vcmask 654336
        %v1449 = vsel %vm1448, %v1447, %v1401
        %vm1450 = vcmask 785408
        %v1451 = vsel %vm1450, %v1449, %v1405
        %vm1452 = vcmask 916480
        %v1453 = vsel %vm1452, %v1451, %v1409
        %v1454 = vsel %vm1440, %v1381, %v1414
        %v1455 = vsel %vm1442, %v1454, %v1418
        %v1456 = vsel %vm1444, %v1455, %v1422
        %v1457 = vsel %vm1446, %v1456, %v1426
        %v1458 = vsel %vm1448, %v1457, %v1430
        %v1459 = vsel %vm1450, %v1458, %v1434
        %v1460 = vsel %vm1452, %v1459, %v1438
        %v1461 = vperm.slane %v1453, 0
        %v1462 = vperm.slane %v1460, 0
        %v1465 = vrot.slane %v1462, 4
        %v1466 = vsel %vm223, %v1461, %v1465
        %v1468 = vmul.f32 %v216, %v1466
        %1469 = vst [vmem:[%s215] sm:$0xff] %v1468
        %s1470 = sand.u32 %s98, 1
        %s1471 = scalar_lea.sflag [#allocation4], %s1470
        %s1472 = sand.u32 %s98, 1
        %s1473 = smul.addr %s1472, 8
        %s1474 = scalar_lea.vmem [#allocation9], %s1473
        // Predicated region
        $region45: #{tpu_custom_call.1} parent=31 // pred_check
          %p1475 = pneg %p108
        $region46: #{tpu_custom_call.1} parent=31 // pred_check_branch
          %1477 = sbr.rel (%p1475) target = $region48
        $region47: #{tpu_custom_call.1} parent=31 // pred_region
          %1479 = vsyncadd %s1471, 0
          %s1480 = smul.addr %s22, 2
          %s1481 = smul.addr %s1480, 4
          %s1482 = scalar_lea.hbm %s3, %s1481
          %s1484 = sshll.u32 %s1474, 4
          %s1485 = int_to_ptr.vmem [resolvable:$true] %s1484
          %s1486 = sshll.u32 %s1482, 4
          %s1487 = int_to_ptr.hbm [resolvable:$true] %s1486
          %1489 = dma.vmem_to_hbm [thread:$0]  %s1485, 128, %s1487, %s1471
        $region48: #{tpu_custom_call.1} parent=31 // pred_fallthru
          _
      $region32: #{tpu_custom_call.1} parent=5 // pred_fallthru
        _
      %p1490 = scmp.le.s32.totalorder 2, %s17
      // Predicated region
      $region49: #{tpu_custom_call.1} parent=5 // pred_check
        %p1491 = pneg %p1490
      $region50: #{tpu_custom_call.1} parent=5 // pred_check_branch
        %1493 = sbr.rel (%p1491) target = $region52
      $region51: #{tpu_custom_call.1} parent=5 // pred_region
        %s1494 = ssub.s32 %s17, 2
        // Predicated region
        $region53: #{tpu_custom_call.1} parent=51 // pred_check
          %p1495 = pneg %p114
        $region54: #{tpu_custom_call.1} parent=51 // pred_check_branch
          %1497 = sbr.rel (%p1495) target = $region56
        $region55: #{tpu_custom_call.1} parent=51 // pred_region
          %s1498 = sand.u32 %s99, 1
          %s1499 = scalar_lea.sflag [#allocation4], %s1498
          %s1500 = sand.u32 %s99, 1
          %s1501 = smul.addr %s1500, 8
          %s1502 = scalar_lea.vmem [#allocation9], %s1501
          %1504 = dma.done %s1499, 128
        $region56: #{tpu_custom_call.1} parent=51 // pred_fallthru
          _
      $region52: #{tpu_custom_call.1} parent=5 // pred_fallthru
        _
    $region6: #{tpu_custom_call.1} parent=1 // loop_footer
      %s21 = sadd.s32 1, %s17
    $region7: #{tpu_custom_call.1} parent=1 // loop_footer_branch
      %16 = sbr.rel target = $region3
    $region8: #{tpu_custom_call.1} parent=1 // loop_exit
      _
    %1505 = vsyncpa [#allocation3], 1
    %s1506 = scalar_lea.sflag [#allocation3], 1
    %1507 = vsyncpa %s1506, 1
    %1508 = vsyncpa [#allocation4], 1
    %s1509 = scalar_lea.sflag [#allocation4], 1
    %1510 = vsyncpa %s1509, 1
    %1511 = vsyncpa [#allocation5], 1
    %s1512 = scalar_lea.sflag [#allocation5], 1
    %1513 = vsyncpa %s1512, 1
    %1514 = vsyncpa [#allocation7], 1

</llo_original>
